<compile_context>
chip_gen: v7x
topology: tpu7x:2x2x1
jax: 0.10.0
libtpu: 0.0.40
codegen_flags: <defaults>
</compile_context>

<pallas_src>
import math

import jax
import jax.numpy as jnp
from jax.experimental import pallas as pl
from jax.experimental.pallas import tpu as pltpu

NUM_CLASSES = 4
LANE = 128
MAX_TILE_ROWS = 1024     # 1024 rows * 128 lanes = 128K pixels / tile
K_PACK = 4096            # packing base: bf16-exact power of two, > MAX_TILE_ROWS


def _make_dice_ce_kernel(num_heads, num_classes):
    """Per-tile kernel: packed per-class dice stats + CE lane-partial sums."""

    def kernel(*refs):
        x_refs = refs[:num_heads]                           # each (C, tile_rows, 128)
        t_ref = refs[num_heads]                             # (tile_rows, 128) int32
        out_refs = refs[num_heads + 1: 2 * num_heads + 1]   # each (8, 128) f32
        tstats_ref = refs[2 * num_heads + 1]                # (8, 128) f32

        tile_rows, lane = t_ref.shape
        t = t_ref[...]

        # Ones LHS routes every sublane reduction through the otherwise-idle MXU.
        ones_lhs = jnp.ones((8, tile_rows), jnp.float32)

        # ---- shared target one-hot masks + per-class target counts ------------
        tmask = [t == c for c in range(num_classes)]
        # Packing factor: K_PACK where target matches (intersection pixel), else 1.
        # Both values (and 0) are bf16-exact, so the MXU reduction below is exact
        # regardless of which matmul precision the backend picks.
        f_pack = [jnp.where(m, float(K_PACK), 1.0) for m in tmask]

        for c in range(num_classes):
            row = jnp.dot(ones_lhs, tmask[c].astype(jnp.float32),
                          preferred_element_type=jnp.float32)
            tstats_ref[c:c + 1, :] = row[0:1, :]            # rows [0:C) used only

        # ---- per-head dice / CE partial sums -----------------------------------
        for x_ref, out_ref in zip(x_refs, out_refs):
            # argmax over channels in the native dtype (first-max tie break:
            # zero-padded pixels argmax to class 0, corrected in the epilogue).
            x_raw = [x_ref[c] for c in range(num_classes)]
            best_val = x_raw[0]
            best_idx = jnp.zeros((tile_rows, lane), jnp.int32)
            for c in range(1, num_classes):
                better = x_raw[c] > best_val
                best_val = jnp.where(better, x_raw[c], best_val)
                best_idx = jnp.where(better, jnp.int32(c), best_idx)

            # stable log-sum-exp in f32 (exp/log go to the EUP slot)
            bv = best_val.astype(jnp.float32)
            z = [x_raw[c].astype(jnp.float32) - bv for c in range(num_classes)]
            esum = jnp.exp(z[0])
            for c in range(1, num_classes):
                esum = esum + jnp.exp(z[c])
            lse = jnp.log(esum)

            # target-class shifted logit via a select chain (no one-hot multiplies);
            # padded pixels (label == C) match no class -> z_tgt = 0, nll = log(C).
            z_tgt = jnp.zeros((tile_rows, lane), jnp.float32)
            for c in range(num_classes):
                z_tgt = jnp.where(tmask[c], z[c], z_tgt)
            nll = lse - z_tgt

            # Dice stats: one packed plane per class, reduced on the MXU.
            # pixel value: 0 (pred != c), 1 (pred == c, tgt != c),
            #              K_PACK (pred == c and tgt == c).
            # Per-lane per-tile sum <= tile_rows * K_PACK < 2^24 -> exact in f32.
            for c in range(num_classes):
                packed = jnp.where(best_idx == c, f_pack[c], 0.0)
                row = jnp.dot(ones_lhs, packed, preferred_element_type=jnp.float32)
                out_ref[c:c + 1, :] = row[0:1, :]

            # CE partial sum stays on the VPU in f32 (no bf16 rounding of nll).
            out_ref[num_classes:num_classes + 1, :] = jnp.sum(
                nll, axis=0, keepdims=True)
            # rows [C+1:8) intentionally left unwritten; epilogue never reads them.

    return kernel


def _round_up(x, m):
    return -(-x // m) * m


def _tiling(hw, max_tile_rows, n_batch):
    rows = _round_up(pl.cdiv(hw, LANE), 8)
    max_tile_rows = max(8, (max_tile_rows // 8) * 8)
    if rows <= max_tile_rows:
        tile_rows, num_tiles = rows, 1
    else:
        tile_rows = max_tile_rows
        num_tiles = pl.cdiv(rows, tile_rows)
    # Keep both v7x TensorCores busy: grid needs at least 2 steps when possible.
    if n_batch * num_tiles < 2 and rows >= 16:
        tile_rows = _round_up(pl.cdiv(rows, 2), 8)
        num_tiles = pl.cdiv(rows, tile_rows)
    rows_padded = num_tiles * tile_rows
    return tile_rows, rows_padded, num_tiles


def dice_ce_loss(inputs: dict, targets, smooth=1.0, max_tile_rows=MAX_TILE_ROWS):
    """inputs: dict name -> (N, C, H, W) logits (f32 or bf16); targets: (N, H, W) ints."""
    names = list(inputs.keys())
    xs = [inputs[n] for n in names]
    num_heads = len(xs)
    N, C, H, W = xs[0].shape
    hw = H * W

    tile_rows, rows_padded, num_tiles = _tiling(hw, max_tile_rows, N)
    assert tile_rows < K_PACK, "packed dice stats require tile_rows < K_PACK"
    hw_padded = rows_padded * LANE
    pad = hw_padded - hw                      # zero-logit / out-of-range-label padding

    def prep_logits(x):
        x = x.reshape(N, C, hw)               # free metadata reshape; NO transpose, NO cast
        if pad:
            x = jnp.pad(x, ((0, 0), (0, 0), (0, pad)))
        return x.reshape(N, C, rows_padded, LANE)

    xs_p = [prep_logits(x) for x in xs]
    # TODO(synk): targets could be stored as int8 upstream to cut HBM bytes on v5e.
    t = targets.reshape(N, hw).astype(jnp.int32)
    if pad:
        # pad with an out-of-range label -> no validity mask needed in the kernel
        t = jnp.pad(t, ((0, 0), (0, pad)), constant_values=C)
    t = t.reshape(N, rows_padded, LANE)

    kernel = _make_dice_ce_kernel(num_heads, C)

    logits_spec = pl.BlockSpec((None, C, tile_rows, LANE), lambda n, tt: (n, 0, tt, 0))
    target_spec = pl.BlockSpec((None, tile_rows, LANE), lambda n, tt: (n, tt, 0))
    out_spec = pl.BlockSpec((None, None, 8, LANE), lambda n, tt: (n, tt, 0, 0))

    out_shapes = tuple(jax.ShapeDtypeStruct((N, num_tiles, 8, LANE), jnp.float32)
                       for _ in range(num_heads + 1))

    logit_itemsize = jnp.dtype(xs[0].dtype).itemsize
    in_bytes = num_heads * N * C * hw_padded * logit_itemsize + N * hw_padded * 4
    out_bytes = (num_heads + 1) * N * num_tiles * 8 * LANE * 4
    cost = pl.CostEstimate(
        flops=int((50 * num_heads + 20) * N * hw_padded),
        transcendentals=int(5 * num_heads * N * hw_padded),
        bytes_accessed=int(in_bytes + out_bytes))

    # Budget: double-buffered input blocks + ~30 live f32 (tile_rows,128) temporaries.
    block_bytes = (num_heads * C * logit_itemsize + 4) * tile_rows * LANE
    vmem_limit = int(max(32 << 20,
                         min(56 << 20,
                             2 * block_bytes + 30 * tile_rows * LANE * 4 + (4 << 20))))

    results = pl.pallas_call(
        kernel,
        out_shape=out_shapes,
        grid=(N, num_tiles),
        in_specs=[logits_spec] * num_heads + [target_spec],
        out_specs=tuple([out_spec] * num_heads) + (out_spec,),
        compiler_params=pltpu.CompilerParams(
            dimension_semantics=("parallel", "parallel"),
            vmem_limit_bytes=vmem_limit),
        cost_estimate=cost,
    )(*xs_p, t)

    head_partials = results[:num_heads]
    tstats = results[num_heads]

    # ---- tiny JAX epilogue: decode packed stats, pad corrections, combine -------
    tm_counts = jnp.sum(tstats[:, :, :C, :], axis=(0, 1, 3))        # (C,) exact ints
    total_pad = float(N * pad)
    total_pixels = float(N * hw)

    losses = {}
    for name, partial in zip(names, head_partials):
        p_int = jnp.round(partial[:, :, :C, :]).astype(jnp.int32)   # exact integers
        inter = jnp.sum((p_int // K_PACK).astype(jnp.float32), axis=(0, 1, 3))
        pm_counts = jnp.sum((p_int % K_PACK).astype(jnp.float32), axis=(0, 1, 3)) + inter
        # zero-padded logits argmax to class 0 -> remove padded pixels from its count
        pm_counts = pm_counts.at[0].add(-total_pad)
        # each padded pixel contributed nll = log(C) (all-zero logits, no target match)
        nll_sum = jnp.sum(partial[:, :, C, :]) - total_pad * math.log(C)
        dice = jnp.mean(1.0 - (2.0 * inter + smooth) / (pm_counts + tm_counts + smooth))
        ce = nll_sum / total_pixels
        losses[name] = ce + dice

    if len(losses) == 1:
        return losses['out']
    return losses['out'] + 0.5 * losses['aux']


# ---------------- pure-JAX reference for verification ----------------
def _reference(inputs, targets, smooth=1.0):
    def one(x):
        pred = jnp.argmax(x, axis=1).reshape(-1)
        tgt = targets.reshape(-1)
        dice = 0.0
        for i in range(NUM_CLASSES):
            pm = (pred == i).astype(jnp.float32)
            tm = (tgt == i).astype(jnp.float32)
            inter = jnp.sum(pm * tm)
            dice += 1.0 - (2.0 * inter + smooth) / (jnp.sum(pm) + jnp.sum(tm) + smooth)
        dice /= NUM_CLASSES
        logp = jax.nn.log_softmax(x.astype(jnp.float32), axis=1)
        nll = -jnp.take_along_axis(logp, targets[:, None, :, :], axis=1)
        return jnp.mean(nll) + dice

    losses = {k: one(v) for k, v in inputs.items()}
    if len(losses) == 1:
        return losses['out']
    return losses['out'] + 0.5 * losses['aux']


if __name__ == "__main__":
    key = jax.random.PRNGKey(0)
    k_out, k_aux, k_t, k2_out, k2_t, _ = jax.random.split(key, 6)

    # Main check: two heads, N=2, C=4, H=W=16 (single padded tile per batch element,
    # exercises the pad-correction epilogue).
    N, C, H, W = 2, 4, 16, 16
    inputs = {
        'out': jax.random.normal(k_out, (N, C, H, W), dtype=jnp.float32),
        'aux': jax.random.normal(k_aux, (N, C, H, W), dtype=jnp.float32),
    }
    targets = jax.random.randint(k_t, (N, H, W), 0, NUM_CLASSES, dtype=jnp.int32)

    loss = jax.block_until_ready(dice_ce_loss(inputs, targets))
    ref = jax.block_until_ready(_reference(inputs, targets))
    assert jnp.allclose(loss, ref, atol=1e-4, rtol=1e-4), (loss, ref)

    # Stress check: single head, multi-tile grid, ragged (padded) last tile.
    N2, H2, W2 = 2, 40, 40                     # HW=1600 -> 13 rows -> 2 tiles of 8 rows
    inputs2 = {'out': jax.random.normal(k2_out, (N2, C, H2, W2), dtype=jnp.float32)}
    targets2 = jax.random.randint(k2_t, (N2, H2, W2), 0, NUM_CLASSES, dtype=jnp.int32)
    loss2 = jax.block_until_ready(dice_ce_loss(inputs2, targets2, max_tile_rows=8))
    ref2 = jax.block_until_ready(_reference(inputs2, targets2))
    assert jnp.allclose(loss2, ref2, atol=1e-4, rtol=1e-4), (loss2, ref2)

    print("KERNEL_OK")
</pallas_src>

<mosaic_0001>
module attributes {stable_mosaic.version = 11 : i64} {
  func.func @kernel(%arg0: i32, %arg1: i32, %arg2: memref<1x4x8x128xf32, #tpu.memory_space<vmem>>, %arg3: memref<1x4x8x128xf32, #tpu.memory_space<vmem>>, %arg4: memref<1x8x128xi32, #tpu.memory_space<vmem>>, %arg5: memref<1x1x8x128xf32, #tpu.memory_space<vmem>>, %arg6: memref<1x1x8x128xf32, #tpu.memory_space<vmem>>, %arg7: memref<1x1x8x128xf32, #tpu.memory_space<vmem>>) attributes {dimension_semantics = [#tpu.dimension_semantics<parallel>, #tpu.dimension_semantics<parallel>], iteration_bounds = array<i64: 2, 1>, scalar_prefetch = 0 : i64, scratch_operands = 0 : i64, tpu.core_type = #tpu.core_type<tc>, window_params = [{transform_indices = @transform_0, window_bounds = array<i64: 1, 4, 8, 128>}, {transform_indices = @transform_1, window_bounds = array<i64: 1, 4, 8, 128>}, {transform_indices = @transform_2, window_bounds = array<i64: 1, 8, 128>}, {transform_indices = @transform_3, window_bounds = array<i64: 1, 1, 8, 128>}, {transform_indices = @transform_4, window_bounds = array<i64: 1, 1, 8, 128>}, {transform_indices = @transform_5, window_bounds = array<i64: 1, 1, 8, 128>}]} {
    %c0 = arith.constant 0 : index
    %c0_0 = arith.constant 0 : index
    %c0_1 = arith.constant 0 : index
    %0 = vector.load %arg4[%c0, %c0_0, %c0_1] : memref<1x8x128xi32, #tpu.memory_space<vmem>>, vector<1x8x128xi32>
    %1 = vector.shape_cast %0 : vector<1x8x128xi32> to vector<8x128xi32>
    %cst = arith.constant 1.000000e+00 : f32
    %2 = vector.broadcast %cst : f32 to vector<8x8xf32>
    %c0_i32 = arith.constant 0 : i32
    %3 = vector.broadcast %c0_i32 : i32 to vector<8x128xi32>
    %4 = arith.cmpi eq, %1, %3 : vector<8x128xi32>
    %c1_i32 = arith.constant 1 : i32
    %5 = vector.broadcast %c1_i32 : i32 to vector<8x128xi32>
    %6 = arith.cmpi eq, %1, %5 : vector<8x128xi32>
    %c2_i32 = arith.constant 2 : i32
    %7 = vector.broadcast %c2_i32 : i32 to vector<8x128xi32>
    %8 = arith.cmpi eq, %1, %7 : vector<8x128xi32>
    %c3_i32 = arith.constant 3 : i32
    %9 = vector.broadcast %c3_i32 : i32 to vector<8x128xi32>
    %10 = arith.cmpi eq, %1, %9 : vector<8x128xi32>
    %cst_2 = arith.constant 4.096000e+03 : f32
    %cst_3 = arith.constant 1.000000e+00 : f32
    %11 = vector.broadcast %cst_2 : f32 to vector<8x128xf32>
    %12 = vector.broadcast %cst_3 : f32 to vector<8x128xf32>
    %13 = arith.select %4, %11, %12 : vector<8x128xi1>, vector<8x128xf32>
    %cst_4 = arith.constant 4.096000e+03 : f32
    %cst_5 = arith.constant 1.000000e+00 : f32
    %14 = vector.broadcast %cst_4 : f32 to vector<8x128xf32>
    %15 = vector.broadcast %cst_5 : f32 to vector<8x128xf32>
    %16 = arith.select %6, %14, %15 : vector<8x128xi1>, vector<8x128xf32>
    %cst_6 = arith.constant 4.096000e+03 : f32
    %cst_7 = arith.constant 1.000000e+00 : f32
    %17 = vector.broadcast %cst_6 : f32 to vector<8x128xf32>
    %18 = vector.broadcast %cst_7 : f32 to vector<8x128xf32>
    %19 = arith.select %8, %17, %18 : vector<8x128xi1>, vector<8x128xf32>
    %cst_8 = arith.constant 4.096000e+03 : f32
    %cst_9 = arith.constant 1.000000e+00 : f32
    %20 = vector.broadcast %cst_8 : f32 to vector<8x128xf32>
    %21 = vector.broadcast %cst_9 : f32 to vector<8x128xf32>
    %22 = arith.select %10, %20, %21 : vector<8x128xi1>, vector<8x128xf32>
    %23 = arith.extui %4 : vector<8x128xi1> to vector<8x128xi32>
    %24 = arith.sitofp %23 : vector<8x128xi32> to vector<8x128xf32>
    %cst_10 = arith.constant dense<0.000000e+00> : vector<8x128xf32>
    %25 = tpu.matmul %2, %24, %cst_10 {dimension_numbers = #tpu.dot_dimension_numbers<[1], [0], [0], [1], [0, 0, 1, 1], [], []>} : vector<8x8xf32>, vector<8x128xf32>, vector<8x128xf32> -> vector<8x128xf32>
    %26 = vector.extract_strided_slice %25 {offsets = [0, 0], sizes = [1, 128], strides = [1, 1]} : vector<8x128xf32> to vector<1x128xf32>
    %c0_11 = arith.constant 0 : index
    %c0_12 = arith.constant 0 : index
    %c0_13 = arith.constant 0 : index
    %c0_14 = arith.constant 0 : index
    %27 = vector.load %arg7[%c0_11, %c0_12, %c0_13, %c0_14] : memref<1x1x8x128xf32, #tpu.memory_space<vmem>>, vector<1x1x1x128xf32>
    %28 = vector.shape_cast %27 : vector<1x1x1x128xf32> to vector<1x128xf32>
    %29 = vector.shape_cast %26 : vector<1x128xf32> to vector<1x1x1x128xf32>
    tpu.vector_store %arg7[%c0_11, %c0_12, %c0_13, %c0_14], %29 {strides = array<i32>} : memref<1x1x8x128xf32, #tpu.memory_space<vmem>>, vector<1x1x1x128xf32>,
    %30 = arith.extui %6 : vector<8x128xi1> to vector<8x128xi32>
    %31 = arith.sitofp %30 : vector<8x128xi32> to vector<8x128xf32>
    %cst_15 = arith.constant dense<0.000000e+00> : vector<8x128xf32>
    %32 = tpu.matmul %2, %31, %cst_15 {dimension_numbers = #tpu.dot_dimension_numbers<[1], [0], [0], [1], [0, 0, 1, 1], [], []>} : vector<8x8xf32>, vector<8x128xf32>, vector<8x128xf32> -> vector<8x128xf32>
    %33 = vector.extract_strided_slice %32 {offsets = [0, 0], sizes = [1, 128], strides = [1, 1]} : vector<8x128xf32> to vector<1x128xf32>
    %c0_16 = arith.constant 0 : index
    %c0_17 = arith.constant 0 : index
    %c1 = arith.constant 1 : index
    %c0_18 = arith.constant 0 : index
    %34 = vector.load %arg7[%c0_16, %c0_17, %c1, %c0_18] : memref<1x1x8x128xf32, #tpu.memory_space<vmem>>, vector<1x1x1x128xf32>
    %35 = vector.shape_cast %34 : vector<1x1x1x128xf32> to vector<1x128xf32>
    %36 = vector.shape_cast %33 : vector<1x128xf32> to vector<1x1x1x128xf32>
    tpu.vector_store %arg7[%c0_16, %c0_17, %c1, %c0_18], %36 {strides = array<i32>} : memref<1x1x8x128xf32, #tpu.memory_space<vmem>>, vector<1x1x1x128xf32>,
    %37 = arith.extui %8 : vector<8x128xi1> to vector<8x128xi32>
    %38 = arith.sitofp %37 : vector<8x128xi32> to vector<8x128xf32>
    %cst_19 = arith.constant dense<0.000000e+00> : vector<8x128xf32>
    %39 = tpu.matmul %2, %38, %cst_19 {dimension_numbers = #tpu.dot_dimension_numbers<[1], [0], [0], [1], [0, 0, 1, 1], [], []>} : vector<8x8xf32>, vector<8x128xf32>, vector<8x128xf32> -> vector<8x128xf32>
    %40 = vector.extract_strided_slice %39 {offsets = [0, 0], sizes = [1, 128], strides = [1, 1]} : vector<8x128xf32> to vector<1x128xf32>
    %c0_20 = arith.constant 0 : index
    %c0_21 = arith.constant 0 : index
    %c2 = arith.constant 2 : index
    %c0_22 = arith.constant 0 : index
    %41 = vector.load %arg7[%c0_20, %c0_21, %c2, %c0_22] : memref<1x1x8x128xf32, #tpu.memory_space<vmem>>, vector<1x1x1x128xf32>
    %42 = vector.shape_cast %41 : vector<1x1x1x128xf32> to vector<1x128xf32>
    %43 = vector.shape_cast %40 : vector<1x128xf32> to vector<1x1x1x128xf32>
    tpu.vector_store %arg7[%c0_20, %c0_21, %c2, %c0_22], %43 {strides = array<i32>} : memref<1x1x8x128xf32, #tpu.memory_space<vmem>>, vector<1x1x1x128xf32>,
    %44 = arith.extui %10 : vector<8x128xi1> to vector<8x128xi32>
    %45 = arith.sitofp %44 : vector<8x128xi32> to vector<8x128xf32>
    %cst_23 = arith.constant dense<0.000000e+00> : vector<8x128xf32>
    %46 = tpu.matmul %2, %45, %cst_23 {dimension_numbers = #tpu.dot_dimension_numbers<[1], [0], [0], [1], [0, 0, 1, 1], [], []>} : vector<8x8xf32>, vector<8x128xf32>, vector<8x128xf32> -> vector<8x128xf32>
    %47 = vector.extract_strided_slice %46 {offsets = [0, 0], sizes = [1, 128], strides = [1, 1]} : vector<8x128xf32> to vector<1x128xf32>
    %c0_24 = arith.constant 0 : index
    %c0_25 = arith.constant 0 : index
    %c3 = arith.constant 3 : index
    %c0_26 = arith.constant 0 : index
    %48 = vector.load %arg7[%c0_24, %c0_25, %c3, %c0_26] : memref<1x1x8x128xf32, #tpu.memory_space<vmem>>, vector<1x1x1x128xf32>
    %49 = vector.shape_cast %48 : vector<1x1x1x128xf32> to vector<1x128xf32>
    %50 = vector.shape_cast %47 : vector<1x128xf32> to vector<1x1x1x128xf32>
    tpu.vector_store %arg7[%c0_24, %c0_25, %c3, %c0_26], %50 {strides = array<i32>} : memref<1x1x8x128xf32, #tpu.memory_space<vmem>>, vector<1x1x1x128xf32>,
    %c0_27 = arith.constant 0 : index
    %c0_28 = arith.constant 0 : index
    %c0_29 = arith.constant 0 : index
    %c0_30 = arith.constant 0 : index
    %51 = vector.load %arg2[%c0_27, %c0_28, %c0_29, %c0_30] : memref<1x4x8x128xf32, #tpu.memory_space<vmem>>, vector<1x1x8x128xf32>
    %52 = vector.shape_cast %51 : vector<1x1x8x128xf32> to vector<8x128xf32>
    %c0_31 = arith.constant 0 : index
    %c1_32 = arith.constant 1 : index
    %c0_33 = arith.constant 0 : index
    %c0_34 = arith.constant 0 : index
    %53 = vector.load %arg2[%c0_31, %c1_32, %c0_33, %c0_34] : memref<1x4x8x128xf32, #tpu.memory_space<vmem>>, vector<1x1x8x128xf32>
    %54 = vector.shape_cast %53 : vector<1x1x8x128xf32> to vector<8x128xf32>
    %c0_35 = arith.constant 0 : index
    %c2_36 = arith.constant 2 : index
    %c0_37 = arith.constant 0 : index
    %c0_38 = arith.constant 0 : index
    %55 = vector.load %arg2[%c0_35, %c2_36, %c0_37, %c0_38] : memref<1x4x8x128xf32, #tpu.memory_space<vmem>>, vector<1x1x8x128xf32>
    %56 = vector.shape_cast %55 : vector<1x1x8x128xf32> to vector<8x128xf32>
    %c0_39 = arith.constant 0 : index
    %c3_40 = arith.constant 3 : index
    %c0_41 = arith.constant 0 : index
    %c0_42 = arith.constant 0 : index
    %57 = vector.load %arg2[%c0_39, %c3_40, %c0_41, %c0_42] : memref<1x4x8x128xf32, #tpu.memory_space<vmem>>, vector<1x1x8x128xf32>
    %58 = vector.shape_cast %57 : vector<1x1x8x128xf32> to vector<8x128xf32>
    %c0_i32_43 = arith.constant 0 : i32
    %59 = vector.broadcast %c0_i32_43 : i32 to vector<8x128xi32>
    %60 = arith.cmpf ogt, %54, %52 : vector<8x128xf32>
    %61 = arith.select %60, %54, %52 : vector<8x128xi1>, vector<8x128xf32>
    %c1_i32_44 = arith.constant 1 : i32
    %62 = vector.broadcast %c1_i32_44 : i32 to vector<8x128xi32>
    %63 = arith.select %60, %62, %59 : vector<8x128xi1>, vector<8x128xi32>
    %64 = arith.cmpf ogt, %56, %61 : vector<8x128xf32>
    %65 = arith.select %64, %56, %61 : vector<8x128xi1>, vector<8x128xf32>
    %c2_i32_45 = arith.constant 2 : i32
    %66 = vector.broadcast %c2_i32_45 : i32 to vector<8x128xi32>
    %67 = arith.select %64, %66, %63 : vector<8x128xi1>, vector<8x128xi32>
    %68 = arith.cmpf ogt, %58, %65 : vector<8x128xf32>
    %69 = arith.select %68, %58, %65 : vector<8x128xi1>, vector<8x128xf32>
    %c3_i32_46 = arith.constant 3 : i32
    %70 = vector.broadcast %c3_i32_46 : i32 to vector<8x128xi32>
    %71 = arith.select %68, %70, %67 : vector<8x128xi1>, vector<8x128xi32>
    %72 = arith.subf %52, %69 : vector<8x128xf32>
    %73 = arith.subf %54, %69 : vector<8x128xf32>
    %74 = arith.subf %56, %69 : vector<8x128xf32>
    %75 = arith.subf %58, %69 : vector<8x128xf32>
    %76 = math.exp %72 : vector<8x128xf32>
    %77 = math.exp %73 : vector<8x128xf32>
    %78 = arith.addf %76, %77 : vector<8x128xf32>
    %79 = math.exp %74 : vector<8x128xf32>
    %80 = arith.addf %78, %79 : vector<8x128xf32>
    %81 = math.exp %75 : vector<8x128xf32>
    %82 = arith.addf %80, %81 : vector<8x128xf32>
    %83 = math.log %82 : vector<8x128xf32>
    %cst_47 = arith.constant 0.000000e+00 : f32
    %84 = vector.broadcast %cst_47 : f32 to vector<8x128xf32>
    %85 = arith.select %4, %72, %84 : vector<8x128xi1>, vector<8x128xf32>
    %86 = arith.select %6, %73, %85 : vector<8x128xi1>, vector<8x128xf32>
    %87 = arith.select %8, %74, %86 : vector<8x128xi1>, vector<8x128xf32>
    %88 = arith.select %10, %75, %87 : vector<8x128xi1>, vector<8x128xf32>
    %89 = arith.subf %83, %88 : vector<8x128xf32>
    %c0_i32_48 = arith.constant 0 : i32
    %90 = vector.broadcast %c0_i32_48 : i32 to vector<8x128xi32>
    %91 = arith.cmpi eq, %71, %90 : vector<8x128xi32>
    %cst_49 = arith.constant 0.000000e+00 : f32
    %92 = vector.broadcast %cst_49 : f32 to vector<8x128xf32>
    %93 = arith.select %91, %13, %92 : vector<8x128xi1>, vector<8x128xf32>
    %cst_50 = arith.constant dense<0.000000e+00> : vector<8x128xf32>
    %94 = tpu.matmul %2, %93, %cst_50 {dimension_numbers = #tpu.dot_dimension_numbers<[1], [0], [0], [1], [0, 0, 1, 1], [], []>} : vector<8x8xf32>, vector<8x128xf32>, vector<8x128xf32> -> vector<8x128xf32>
    %95 = vector.extract_strided_slice %94 {offsets = [0, 0], sizes = [1, 128], strides = [1, 1]} : vector<8x128xf32> to vector<1x128xf32>
    %c0_51 = arith.constant 0 : index
    %c0_52 = arith.constant 0 : index
    %c0_53 = arith.constant 0 : index
    %c0_54 = arith.constant 0 : index
    %96 = vector.load %arg5[%c0_51, %c0_52, %c0_53, %c0_54] : memref<1x1x8x128xf32, #tpu.memory_space<vmem>>, vector<1x1x1x128xf32>
    %97 = vector.shape_cast %96 : vector<1x1x1x128xf32> to vector<1x128xf32>
    %98 = vector.shape_cast %95 : vector<1x128xf32> to vector<1x1x1x128xf32>
    tpu.vector_store %arg5[%c0_51, %c0_52, %c0_53, %c0_54], %98 {strides = array<i32>} : memref<1x1x8x128xf32, #tpu.memory_space<vmem>>, vector<1x1x1x128xf32>,
    %c1_i32_55 = arith.constant 1 : i32
    %99 = vector.broadcast %c1_i32_55 : i32 to vector<8x128xi32>
    %100 = arith.cmpi eq, %71, %99 : vector<8x128xi32>
    %cst_56 = arith.constant 0.000000e+00 : f32
    %101 = vector.broadcast %cst_56 : f32 to vector<8x128xf32>
    %102 = arith.select %100, %16, %101 : vector<8x128xi1>, vector<8x128xf32>
    %cst_57 = arith.constant dense<0.000000e+00> : vector<8x128xf32>
    %103 = tpu.matmul %2, %102, %cst_57 {dimension_numbers = #tpu.dot_dimension_numbers<[1], [0], [0], [1], [0, 0, 1, 1], [], []>} : vector<8x8xf32>, vector<8x128xf32>, vector<8x128xf32> -> vector<8x128xf32>
    %104 = vector.extract_strided_slice %103 {offsets = [0, 0], sizes = [1, 128], strides = [1, 1]} : vector<8x128xf32> to vector<1x128xf32>
    %c0_58 = arith.constant 0 : index
    %c0_59 = arith.constant 0 : index
    %c1_60 = arith.constant 1 : index
    %c0_61 = arith.constant 0 : index
    %105 = vector.load %arg5[%c0_58, %c0_59, %c1_60, %c0_61] : memref<1x1x8x128xf32, #tpu.memory_space<vmem>>, vector<1x1x1x128xf32>
    %106 = vector.shape_cast %105 : vector<1x1x1x128xf32> to vector<1x128xf32>
    %107 = vector.shape_cast %104 : vector<1x128xf32> to vector<1x1x1x128xf32>
    tpu.vector_store %arg5[%c0_58, %c0_59, %c1_60, %c0_61], %107 {strides = array<i32>} : memref<1x1x8x128xf32, #tpu.memory_space<vmem>>, vector<1x1x1x128xf32>,
    %c2_i32_62 = arith.constant 2 : i32
    %108 = vector.broadcast %c2_i32_62 : i32 to vector<8x128xi32>
    %109 = arith.cmpi eq, %71, %108 : vector<8x128xi32>
    %cst_63 = arith.constant 0.000000e+00 : f32
    %110 = vector.broadcast %cst_63 : f32 to vector<8x128xf32>
    %111 = arith.select %109, %19, %110 : vector<8x128xi1>, vector<8x128xf32>
    %cst_64 = arith.constant dense<0.000000e+00> : vector<8x128xf32>
    %112 = tpu.matmul %2, %111, %cst_64 {dimension_numbers = #tpu.dot_dimension_numbers<[1], [0], [0], [1], [0, 0, 1, 1], [], []>} : vector<8x8xf32>, vector<8x128xf32>, vector<8x128xf32> -> vector<8x128xf32>
    %113 = vector.extract_strided_slice %112 {offsets = [0, 0], sizes = [1, 128], strides = [1, 1]} : vector<8x128xf32> to vector<1x128xf32>
    %c0_65 = arith.constant 0 : index
    %c0_66 = arith.constant 0 : index
    %c2_67 = arith.constant 2 : index
    %c0_68 = arith.constant 0 : index
    %114 = vector.load %arg5[%c0_65, %c0_66, %c2_67, %c0_68] : memref<1x1x8x128xf32, #tpu.memory_space<vmem>>, vector<1x1x1x128xf32>
    %115 = vector.shape_cast %114 : vector<1x1x1x128xf32> to vector<1x128xf32>
    %116 = vector.shape_cast %113 : vector<1x128xf32> to vector<1x1x1x128xf32>
    tpu.vector_store %arg5[%c0_65, %c0_66, %c2_67, %c0_68], %116 {strides = array<i32>} : memref<1x1x8x128xf32, #tpu.memory_space<vmem>>, vector<1x1x1x128xf32>,
    %c3_i32_69 = arith.constant 3 : i32
    %117 = vector.broadcast %c3_i32_69 : i32 to vector<8x128xi32>
    %118 = arith.cmpi eq, %71, %117 : vector<8x128xi32>
    %cst_70 = arith.constant 0.000000e+00 : f32
    %119 = vector.broadcast %cst_70 : f32 to vector<8x128xf32>
    %120 = arith.select %118, %22, %119 : vector<8x128xi1>, vector<8x128xf32>
    %cst_71 = arith.constant dense<0.000000e+00> : vector<8x128xf32>
    %121 = tpu.matmul %2, %120, %cst_71 {dimension_numbers = #tpu.dot_dimension_numbers<[1], [0], [0], [1], [0, 0, 1, 1], [], []>} : vector<8x8xf32>, vector<8x128xf32>, vector<8x128xf32> -> vector<8x128xf32>
    %122 = vector.extract_strided_slice %121 {offsets = [0, 0], sizes = [1, 128], strides = [1, 1]} : vector<8x128xf32> to vector<1x128xf32>
    %c0_72 = arith.constant 0 : index
    %c0_73 = arith.constant 0 : index
    %c3_74 = arith.constant 3 : index
    %c0_75 = arith.constant 0 : index
    %123 = vector.load %arg5[%c0_72, %c0_73, %c3_74, %c0_75] : memref<1x1x8x128xf32, #tpu.memory_space<vmem>>, vector<1x1x1x128xf32>
    %124 = vector.shape_cast %123 : vector<1x1x1x128xf32> to vector<1x128xf32>
    %125 = vector.shape_cast %122 : vector<1x128xf32> to vector<1x1x1x128xf32>
    tpu.vector_store %arg5[%c0_72, %c0_73, %c3_74, %c0_75], %125 {strides = array<i32>} : memref<1x1x8x128xf32, #tpu.memory_space<vmem>>, vector<1x1x1x128xf32>,
    %cst_76 = arith.constant dense<0.000000e+00> : vector<128xf32>
    %126 = vector.multi_reduction <add>, %89, %cst_76 [0] : vector<8x128xf32> to vector<128xf32>
    %127 = vector.shape_cast %126 : vector<128xf32> to vector<1x128xf32>
    %c0_77 = arith.constant 0 : index
    %c0_78 = arith.constant 0 : index
    %c4 = arith.constant 4 : index
    %c0_79 = arith.constant 0 : index
    %128 = vector.load %arg5[%c0_77, %c0_78, %c4, %c0_79] : memref<1x1x8x128xf32, #tpu.memory_space<vmem>>, vector<1x1x1x128xf32>
    %129 = vector.shape_cast %128 : vector<1x1x1x128xf32> to vector<1x128xf32>
    %130 = vector.shape_cast %127 : vector<1x128xf32> to vector<1x1x1x128xf32>
    tpu.vector_store %arg5[%c0_77, %c0_78, %c4, %c0_79], %130 {strides = array<i32>} : memref<1x1x8x128xf32, #tpu.memory_space<vmem>>, vector<1x1x1x128xf32>,
    %c0_80 = arith.constant 0 : index
    %c0_81 = arith.constant 0 : index
    %c0_82 = arith.constant 0 : index
    %c0_83 = arith.constant 0 : index
    %131 = vector.load %arg3[%c0_80, %c0_81, %c0_82, %c0_83] : memref<1x4x8x128xf32, #tpu.memory_space<vmem>>, vector<1x1x8x128xf32>
    %132 = vector.shape_cast %131 : vector<1x1x8x128xf32> to vector<8x128xf32>
    %c0_84 = arith.constant 0 : index
    %c1_85 = arith.constant 1 : index
    %c0_86 = arith.constant 0 : index
    %c0_87 = arith.constant 0 : index
    %133 = vector.load %arg3[%c0_84, %c1_85, %c0_86, %c0_87] : memref<1x4x8x128xf32, #tpu.memory_space<vmem>>, vector<1x1x8x128xf32>
    %134 = vector.shape_cast %133 : vector<1x1x8x128xf32> to vector<8x128xf32>
    %c0_88 = arith.constant 0 : index
    %c2_89 = arith.constant 2 : index
    %c0_90 = arith.constant 0 : index
    %c0_91 = arith.constant 0 : index
    %135 = vector.load %arg3[%c0_88, %c2_89, %c0_90, %c0_91] : memref<1x4x8x128xf32, #tpu.memory_space<vmem>>, vector<1x1x8x128xf32>
    %136 = vector.shape_cast %135 : vector<1x1x8x128xf32> to vector<8x128xf32>
    %c0_92 = arith.constant 0 : index
    %c3_93 = arith.constant 3 : index
    %c0_94 = arith.constant 0 : index
    %c0_95 = arith.constant 0 : index
    %137 = vector.load %arg3[%c0_92, %c3_93, %c0_94, %c0_95] : memref<1x4x8x128xf32, #tpu.memory_space<vmem>>, vector<1x1x8x128xf32>
    %138 = vector.shape_cast %137 : vector<1x1x8x128xf32> to vector<8x128xf32>
    %c0_i32_96 = arith.constant 0 : i32
    %139 = vector.broadcast %c0_i32_96 : i32 to vector<8x128xi32>
    %140 = arith.cmpf ogt, %134, %132 : vector<8x128xf32>
    %141 = arith.select %140, %134, %132 : vector<8x128xi1>, vector<8x128xf32>
    %c1_i32_97 = arith.constant 1 : i32
    %142 = vector.broadcast %c1_i32_97 : i32 to vector<8x128xi32>
    %143 = arith.select %140, %142, %139 : vector<8x128xi1>, vector<8x128xi32>
    %144 = arith.cmpf ogt, %136, %141 : vector<8x128xf32>
    %145 = arith.select %144, %136, %141 : vector<8x128xi1>, vector<8x128xf32>
    %c2_i32_98 = arith.constant 2 : i32
    %146 = vector.broadcast %c2_i32_98 : i32 to vector<8x128xi32>
    %147 = arith.select %144, %146, %143 : vector<8x128xi1>, vector<8x128xi32>
    %148 = arith.cmpf ogt, %138, %145 : vector<8x128xf32>
    %149 = arith.select %148, %138, %145 : vector<8x128xi1>, vector<8x128xf32>
    %c3_i32_99 = arith.constant 3 : i32
    %150 = vector.broadcast %c3_i32_99 : i32 to vector<8x128xi32>
    %151 = arith.select %148, %150, %147 : vector<8x128xi1>, vector<8x128xi32>
    %152 = arith.subf %132, %149 : vector<8x128xf32>
    %153 = arith.subf %134, %149 : vector<8x128xf32>
    %154 = arith.subf %136, %149 : vector<8x128xf32>
    %155 = arith.subf %138, %149 : vector<8x128xf32>
    %156 = math.exp %152 : vector<8x128xf32>
    %157 = math.exp %153 : vector<8x128xf32>
    %158 = arith.addf %156, %157 : vector<8x128xf32>
    %159 = math.exp %154 : vector<8x128xf32>
    %160 = arith.addf %158, %159 : vector<8x128xf32>
    %161 = math.exp %155 : vector<8x128xf32>
    %162 = arith.addf %160, %161 : vector<8x128xf32>
    %163 = math.log %162 : vector<8x128xf32>
    %cst_100 = arith.constant 0.000000e+00 : f32
    %164 = vector.broadcast %cst_100 : f32 to vector<8x128xf32>
    %165 = arith.select %4, %152, %164 : vector<8x128xi1>, vector<8x128xf32>
    %166 = arith.select %6, %153, %165 : vector<8x128xi1>, vector<8x128xf32>
    %167 = arith.select %8, %154, %166 : vector<8x128xi1>, vector<8x128xf32>
    %168 = arith.select %10, %155, %167 : vector<8x128xi1>, vector<8x128xf32>
    %169 = arith.subf %163, %168 : vector<8x128xf32>
    %c0_i32_101 = arith.constant 0 : i32
    %170 = vector.broadcast %c0_i32_101 : i32 to vector<8x128xi32>
    %171 = arith.cmpi eq, %151, %170 : vector<8x128xi32>
    %cst_102 = arith.constant 0.000000e+00 : f32
    %172 = vector.broadcast %cst_102 : f32 to vector<8x128xf32>
    %173 = arith.select %171, %13, %172 : vector<8x128xi1>, vector<8x128xf32>
    %cst_103 = arith.constant dense<0.000000e+00> : vector<8x128xf32>
    %174 = tpu.matmul %2, %173, %cst_103 {dimension_numbers = #tpu.dot_dimension_numbers<[1], [0], [0], [1], [0, 0, 1, 1], [], []>} : vector<8x8xf32>, vector<8x128xf32>, vector<8x128xf32> -> vector<8x128xf32>
    %175 = vector.extract_strided_slice %174 {offsets = [0, 0], sizes = [1, 128], strides = [1, 1]} : vector<8x128xf32> to vector<1x128xf32>
    %c0_104 = arith.constant 0 : index
    %c0_105 = arith.constant 0 : index
    %c0_106 = arith.constant 0 : index
    %c0_107 = arith.constant 0 : index
    %176 = vector.load %arg6[%c0_104, %c0_105, %c0_106, %c0_107] : memref<1x1x8x128xf32, #tpu.memory_space<vmem>>, vector<1x1x1x128xf32>
    %177 = vector.shape_cast %176 : vector<1x1x1x128xf32> to vector<1x128xf32>
    %178 = vector.shape_cast %175 : vector<1x128xf32> to vector<1x1x1x128xf32>
    tpu.vector_store %arg6[%c0_104, %c0_105, %c0_106, %c0_107], %178 {strides = array<i32>} : memref<1x1x8x128xf32, #tpu.memory_space<vmem>>, vector<1x1x1x128xf32>,
    %c1_i32_108 = arith.constant 1 : i32
    %179 = vector.broadcast %c1_i32_108 : i32 to vector<8x128xi32>
    %180 = arith.cmpi eq, %151, %179 : vector<8x128xi32>
    %cst_109 = arith.constant 0.000000e+00 : f32
    %181 = vector.broadcast %cst_109 : f32 to vector<8x128xf32>
    %182 = arith.select %180, %16, %181 : vector<8x128xi1>, vector<8x128xf32>
    %cst_110 = arith.constant dense<0.000000e+00> : vector<8x128xf32>
    %183 = tpu.matmul %2, %182, %cst_110 {dimension_numbers = #tpu.dot_dimension_numbers<[1], [0], [0], [1], [0, 0, 1, 1], [], []>} : vector<8x8xf32>, vector<8x128xf32>, vector<8x128xf32> -> vector<8x128xf32>
    %184 = vector.extract_strided_slice %183 {offsets = [0, 0], sizes = [1, 128], strides = [1, 1]} : vector<8x128xf32> to vector<1x128xf32>
    %c0_111 = arith.constant 0 : index
    %c0_112 = arith.constant 0 : index
    %c1_113 = arith.constant 1 : index
    %c0_114 = arith.constant 0 : index
    %185 = vector.load %arg6[%c0_111, %c0_112, %c1_113, %c0_114] : memref<1x1x8x128xf32, #tpu.memory_space<vmem>>, vector<1x1x1x128xf32>
    %186 = vector.shape_cast %185 : vector<1x1x1x128xf32> to vector<1x128xf32>
    %187 = vector.shape_cast %184 : vector<1x128xf32> to vector<1x1x1x128xf32>
    tpu.vector_store %arg6[%c0_111, %c0_112, %c1_113, %c0_114], %187 {strides = array<i32>} : memref<1x1x8x128xf32, #tpu.memory_space<vmem>>, vector<1x1x1x128xf32>,
    %c2_i32_115 = arith.constant 2 : i32
    %188 = vector.broadcast %c2_i32_115 : i32 to vector<8x128xi32>
    %189 = arith.cmpi eq, %151, %188 : vector<8x128xi32>
    %cst_116 = arith.constant 0.000000e+00 : f32
    %190 = vector.broadcast %cst_116 : f32 to vector<8x128xf32>
    %191 = arith.select %189, %19, %190 : vector<8x128xi1>, vector<8x128xf32>
    %cst_117 = arith.constant dense<0.000000e+00> : vector<8x128xf32>
    %192 = tpu.matmul %2, %191, %cst_117 {dimension_numbers = #tpu.dot_dimension_numbers<[1], [0], [0], [1], [0, 0, 1, 1], [], []>} : vector<8x8xf32>, vector<8x128xf32>, vector<8x128xf32> -> vector<8x128xf32>
    %193 = vector.extract_strided_slice %192 {offsets = [0, 0], sizes = [1, 128], strides = [1, 1]} : vector<8x128xf32> to vector<1x128xf32>
    %c0_118 = arith.constant 0 : index
    %c0_119 = arith.constant 0 : index
    %c2_120 = arith.constant 2 : index
    %c0_121 = arith.constant 0 : index
    %194 = vector.load %arg6[%c0_118, %c0_119, %c2_120, %c0_121] : memref<1x1x8x128xf32, #tpu.memory_space<vmem>>, vector<1x1x1x128xf32>
    %195 = vector.shape_cast %194 : vector<1x1x1x128xf32> to vector<1x128xf32>
    %196 = vector.shape_cast %193 : vector<1x128xf32> to vector<1x1x1x128xf32>
    tpu.vector_store %arg6[%c0_118, %c0_119, %c2_120, %c0_121], %196 {strides = array<i32>} : memref<1x1x8x128xf32, #tpu.memory_space<vmem>>, vector<1x1x1x128xf32>,
    %c3_i32_122 = arith.constant 3 : i32
    %197 = vector.broadcast %c3_i32_122 : i32 to vector<8x128xi32>
    %198 = arith.cmpi eq, %151, %197 : vector<8x128xi32>
    %cst_123 = arith.constant 0.000000e+00 : f32
    %199 = vector.broadcast %cst_123 : f32 to vector<8x128xf32>
    %200 = arith.select %198, %22, %199 : vector<8x128xi1>, vector<8x128xf32>
    %cst_124 = arith.constant dense<0.000000e+00> : vector<8x128xf32>
    %201 = tpu.matmul %2, %200, %cst_124 {dimension_numbers = #tpu.dot_dimension_numbers<[1], [0], [0], [1], [0, 0, 1, 1], [], []>} : vector<8x8xf32>, vector<8x128xf32>, vector<8x128xf32> -> vector<8x128xf32>
    %202 = vector.extract_strided_slice %201 {offsets = [0, 0], sizes = [1, 128], strides = [1, 1]} : vector<8x128xf32> to vector<1x128xf32>
    %c0_125 = arith.constant 0 : index
    %c0_126 = arith.constant 0 : index
    %c3_127 = arith.constant 3 : index
    %c0_128 = arith.constant 0 : index
    %203 = vector.load %arg6[%c0_125, %c0_126, %c3_127, %c0_128] : memref<1x1x8x128xf32, #tpu.memory_space<vmem>>, vector<1x1x1x128xf32>
    %204 = vector.shape_cast %203 : vector<1x1x1x128xf32> to vector<1x128xf32>
    %205 = vector.shape_cast %202 : vector<1x128xf32> to vector<1x1x1x128xf32>
    tpu.vector_store %arg6[%c0_125, %c0_126, %c3_127, %c0_128], %205 {strides = array<i32>} : memref<1x1x8x128xf32, #tpu.memory_space<vmem>>, vector<1x1x1x128xf32>,
    %cst_129 = arith.constant dense<0.000000e+00> : vector<128xf32>
    %206 = vector.multi_reduction <add>, %169, %cst_129 [0] : vector<8x128xf32> to vector<128xf32>
    %207 = vector.shape_cast %206 : vector<128xf32> to vector<1x128xf32>
    %c0_130 = arith.constant 0 : index
    %c0_131 = arith.constant 0 : index
    %c4_132 = arith.constant 4 : index
    %c0_133 = arith.constant 0 : index
    %208 = vector.load %arg6[%c0_130, %c0_131, %c4_132, %c0_133] : memref<1x1x8x128xf32, #tpu.memory_space<vmem>>, vector<1x1x1x128xf32>
    %209 = vector.shape_cast %208 : vector<1x1x1x128xf32> to vector<1x128xf32>
    %210 = vector.shape_cast %207 : vector<1x128xf32> to vector<1x1x1x128xf32>
    tpu.vector_store %arg6[%c0_130, %c0_131, %c4_132, %c0_133], %210 {strides = array<i32>} : memref<1x1x8x128xf32, #tpu.memory_space<vmem>>, vector<1x1x1x128xf32>,
    return
  }
  func.func @transform_0(%arg0: i32, %arg1: i32) -> (i32, i32, i32, i32) {
    %c0_i32 = arith.constant 0 : i32
    %c0_i32_0 = arith.constant 0 : i32
    %c0_i32_1 = arith.constant 0 : i32
    return %arg0, %c0_i32, %arg1, %c0_i32_0 : i32, i32, i32, i32
  }
  func.func @transform_1(%arg0: i32, %arg1: i32) -> (i32, i32, i32, i32) {
    %c0_i32 = arith.constant 0 : i32
    %c0_i32_0 = arith.constant 0 : i32
    %c0_i32_1 = arith.constant 0 : i32
    return %arg0, %c0_i32, %arg1, %c0_i32_0 : i32, i32, i32, i32
  }
  func.func @transform_2(%arg0: i32, %arg1: i32) -> (i32, i32, i32) {
    %c0_i32 = arith.constant 0 : i32
    %c0_i32_0 = arith.constant 0 : i32
    return %arg0, %arg1, %c0_i32 : i32, i32, i32
  }
  func.func @transform_3(%arg0: i32, %arg1: i32) -> (i32, i32, i32, i32) {
    %c0_i32 = arith.constant 0 : i32
    %c0_i32_0 = arith.constant 0 : i32
    %c0_i32_1 = arith.constant 0 : i32
    return %arg0, %arg1, %c0_i32, %c0_i32_0 : i32, i32, i32, i32
  }
  func.func @transform_4(%arg0: i32, %arg1: i32) -> (i32, i32, i32, i32) {
    %c0_i32 = arith.constant 0 : i32
    %c0_i32_0 = arith.constant 0 : i32
    %c0_i32_1 = arith.constant 0 : i32
    return %arg0, %arg1, %c0_i32, %c0_i32_0 : i32, i32, i32, i32
  }
  func.func @transform_5(%arg0: i32, %arg1: i32) -> (i32, i32, i32, i32) {
    %c0_i32 = arith.constant 0 : i32
    %c0_i32_0 = arith.constant 0 : i32
    %c0_i32_1 = arith.constant 0 : i32
    return %arg0, %arg1, %c0_i32, %c0_i32_0 : i32, i32, i32, i32
  }
}

</mosaic_0001>

<llo_original>
// kernel: tpu_custom_call.1
$region0: #{tpu_custom_call.1}
  #allocation0 [shape = 'u32[]', space=smem, size = 0x4, offset = 0x4, fixed_abs, tag = 'smem constant byte address 0x4 - core index']
  #allocation1 [shape = 'u32[144,128]{1,0:T(1,128)}', space=vmem, size = 0x12000, scoped, tag = 'internal scratch']
  %s0 = inlined_call_operand.hbm [shape: f32[2,4,8,128], index: 0, kind: input, shape index: {}]
  %s1 = inlined_call_operand.hbm [shape: f32[2,4,8,128], index: 1, kind: input, shape index: {}]
  %s2 = inlined_call_operand.hbm [shape: s32[2,8,128], index: 2, kind: input, shape index: {}]
  %s3 = inlined_call_operand.hbm [shape: f32[2,1,8,128], index: 3, kind: output, shape index: {0}]
  %s4 = inlined_call_operand.hbm [shape: f32[2,1,8,128], index: 4, kind: output, shape index: {1}]
  %s5 = inlined_call_operand.hbm [shape: f32[2,1,8,128], index: 5, kind: output, shape index: {2}]
  %6 = xla_tuple %s3, %s4, %s5
  %s7 = sld [smem:[#allocation0]]
  $region73: #{tpu_custom_call.1} parent=0
    _
  %s9 = ssub.s32 1, %s7
  %s10 = scalar_select 0, %s9, %s7
  $region1: #{tpu_custom_call.1} parent=0
    #allocation2 [shape = 'u8[32768]{0}', space=vmem, size = 0x8000, scoped, tag = 'input window, operand 0']
    #allocation3 [shape = 's32[2]{0}', space=sflag, size = 0x8, scoped, tag = 'scoped memory for tpu_custom_call.1']
    #allocation4 [shape = 's32[2]{0}', space=sflag, size = 0x8, scoped, tag = 'scoped memory for tpu_custom_call.1']
    #allocation5 [shape = 'u8[32768]{0}', space=vmem, size = 0x8000, scoped, tag = 'input window, operand 1']
    #allocation6 [shape = 's32[2]{0}', space=sflag, size = 0x8, scoped, tag = 'scoped memory for tpu_custom_call.1']
    #allocation7 [shape = 'u8[8192]{0}', space=vmem, size = 0x2000, scoped, tag = 'input window, operand 2']
    #allocation8 [shape = 'u8[8192]{0}', space=vmem, size = 0x2000, scoped, tag = 'output window, operand 0']
    #allocation9 [shape = 'u8[8192]{0}', space=vmem, size = 0x2000, scoped, tag = 'output window, operand 1']
    #allocation10 [shape = 's32[2]{0}', space=sflag, size = 0x8, scoped, tag = 'scoped memory for tpu_custom_call.1']
    #allocation11 [shape = 'u8[8192]{0}', space=vmem, size = 0x2000, scoped, tag = 'output window, operand 2']
    %11 = vsyncpa [#allocation3], 0
    %s12 = scalar_lea.sflag [#allocation3], 1
    %13 = vsyncpa %s12, 0
    %14 = vsyncpa [#allocation6], 0
    %s15 = scalar_lea.sflag [#allocation6], 1
    %16 = vsyncpa %s15, 0
    %17 = vsyncpa [#allocation4], 0
    %s18 = scalar_lea.sflag [#allocation4], 1
    %19 = vsyncpa %s18, 0
    %20 = vsyncpa [#allocation10], 0
    %s21 = scalar_lea.sflag [#allocation10], 1
    %22 = vsyncpa %s21, 0
    loop: start=0, step=1, limit=4
    $region2: #{tpu_custom_call.1} parent=1 // loop_pre_header
      _
    $region3: #{tpu_custom_call.1} parent=1 // loop_header
      %s24 = sphi 0, %s28
      %p25 = scmp.ge.s32.totalorder %s24, 4
      %s31 = sphi 0, %s43
      %s32 = sphi 0, %s39
      %s33 = sphi 0, %s31
      %s34 = sphi 0, %s32
      %s35 = sphi 0, %s33
      %s36 = sphi 0, %s34
      %s48 = sphi 0, %s50
      %s51 = sphi 0, %s48
      %s52 = sphi 0, %s51
      %s68 = sphi 0, %s52
      %s76 = sphi 0, %s78
      %s79 = sphi 0, %s76
      %s80 = sphi 0, %s79
      %s96 = sphi 0, %s80
      %s104 = sphi 0, %s106
      %s107 = sphi 0, %s104
      %s108 = sphi 0, %s107
      %s124 = sphi 0, %s108
      %s132 = sphi 0, %s134
      %s135 = sphi 0, %s132
      %s136 = sphi 0, %s135
      %s152 = sphi 0, %s136
      %s160 = sphi 0, %s162
      %s163 = sphi 0, %s160
      %s164 = sphi 0, %s163
      %s180 = sphi 0, %s164
      %s188 = sphi 0, %s190
      %s191 = sphi 0, %s188
      %s192 = sphi 0, %s191
      %s208 = sphi 0, %s192
    $region4: #{tpu_custom_call.1} parent=1 // loop_header_branch
      %27 = sbr.rel (%p25) target = $region8
    $region5: #{tpu_custom_call.1} parent=1 // loop_body
      %s29 = ssub.s32 %s24, 1
      %s30 = ssub.s32 %s24, 2
      %s37 = sadd.s32 1, %s32
      %p38 = scmp.ge.s32.totalorder %s37, 1
      %s39 = scalar_select %p38, 0, %s37
      %s40 = sadd.s32 1, %s31
      %s41 = scalar_select %p38, %s40, %s31
      %p42 = scmp.ge.s32.totalorder %s41, 2
      %s43 = scalar_select %p42, 0, %s41
      %s44 = ssub.s32 %s31, %s43
      %s45 = ssub.s32 %s32, %s39
      %s46 = sor.u32 %s44, %s45
      %p47 = scmp.eq.s32.totalorder %s46, 0
      %s49 = sadd.s32 %s48, 1
      %s50 = scalar_select %p47, %s48, %s49
      %p53 = pneg %p47
      %p54 = scmp.eq.s32.totalorder %s24, 1
      %p55 = por %p53, %p54
      %p56 = scmp.ne.s32.totalorder %s48, %s51
      %p57 = scmp.eq.s32.totalorder %s24, 0
      %p58 = por %p56, %p57
      %p59 = scmp.ne.s32.totalorder %s48, %s51
      %p60 = scmp.eq.s32.totalorder %s29, 1
      %p61 = por %p59, %p60
      %p62 = scmp.ne.s32.totalorder %s51, %s52
      %p63 = scmp.eq.s32.totalorder %s29, 0
      %p64 = por %p62, %p63
      %p65 = scmp.ne.s32.totalorder %s51, %s52
      %p66 = scmp.eq.s32.totalorder %s30, 1
      %p67 = por %p65, %p66
      %p69 = scmp.ne.s32.totalorder %s52, %s68
      %p70 = scmp.eq.s32.totalorder %s30, 0
      %p71 = por %p69, %p70
      %s72 = ssub.s32 %s31, %s43
      %s73 = ssub.s32 %s32, %s39
      %s74 = sor.u32 %s72, %s73
      %p75 = scmp.eq.s32.totalorder %s74, 0
      %s77 = sadd.s32 %s76, 1
      %s78 = scalar_select %p75, %s76, %s77
      %p81 = pneg %p75
      %p82 = scmp.eq.s32.totalorder %s24, 1
      %p83 = por %p81, %p82
      %p84 = scmp.ne.s32.totalorder %s76, %s79
      %p85 = scmp.eq.s32.totalorder %s24, 0
      %p86 = por %p84, %p85
      %p87 = scmp.ne.s32.totalorder %s76, %s79
      %p88 = scmp.eq.s32.totalorder %s29, 1
      %p89 = por %p87, %p88
      %p90 = scmp.ne.s32.totalorder %s79, %s80
      %p91 = scmp.eq.s32.totalorder %s29, 0
      %p92 = por %p90, %p91
      %p93 = scmp.ne.s32.totalorder %s79, %s80
      %p94 = scmp.eq.s32.totalorder %s30, 1
      %p95 = por %p93, %p94
      %p97 = scmp.ne.s32.totalorder %s80, %s96
      %p98 = scmp.eq.s32.totalorder %s30, 0
      %p99 = por %p97, %p98
      %s100 = ssub.s32 %s31, %s43
      %s101 = ssub.s32 %s32, %s39
      %s102 = sor.u32 %s100, %s101
      %p103 = scmp.eq.s32.totalorder %s102, 0
      %s105 = sadd.s32 %s104, 1
      %s106 = scalar_select %p103, %s104, %s105
      %p109 = pneg %p103
      %p110 = scmp.eq.s32.totalorder %s24, 1
      %p111 = por %p109, %p110
      %p112 = scmp.ne.s32.totalorder %s104, %s107
      %p113 = scmp.eq.s32.totalorder %s24, 0
      %p114 = por %p112, %p113
      %p115 = scmp.ne.s32.totalorder %s104, %s107
      %p116 = scmp.eq.s32.totalorder %s29, 1
      %p117 = por %p115, %p116
      %p118 = scmp.ne.s32.totalorder %s107, %s108
      %p119 = scmp.eq.s32.totalorder %s29, 0
      %p120 = por %p118, %p119
      %p121 = scmp.ne.s32.totalorder %s107, %s108
      %p122 = scmp.eq.s32.totalorder %s30, 1
      %p123 = por %p121, %p122
      %p125 = scmp.ne.s32.totalorder %s108, %s124
      %p126 = scmp.eq.s32.totalorder %s30, 0
      %p127 = por %p125, %p126
      %s128 = ssub.s32 %s31, %s43
      %s129 = ssub.s32 %s32, %s39
      %s130 = sor.u32 %s128, %s129
      %p131 = scmp.eq.s32.totalorder %s130, 0
      %s133 = sadd.s32 %s132, 1
      %s134 = scalar_select %p131, %s132, %s133
      %p137 = pneg %p131
      %p138 = scmp.eq.s32.totalorder %s24, 1
      %p139 = por %p137, %p138
      %p140 = scmp.ne.s32.totalorder %s132, %s135
      %p141 = scmp.eq.s32.totalorder %s24, 0
      %p142 = por %p140, %p141
      %p143 = scmp.ne.s32.totalorder %s132, %s135
      %p144 = scmp.eq.s32.totalorder %s29, 1
      %p145 = por %p143, %p144
      %p146 = scmp.ne.s32.totalorder %s135, %s136
      %p147 = scmp.eq.s32.totalorder %s29, 0
      %p148 = por %p146, %p147
      %p149 = scmp.ne.s32.totalorder %s135, %s136
      %p150 = scmp.eq.s32.totalorder %s30, 1
      %p151 = por %p149, %p150
      %p153 = scmp.ne.s32.totalorder %s136, %s152
      %p154 = scmp.eq.s32.totalorder %s30, 0
      %p155 = por %p153, %p154
      %s156 = ssub.s32 %s31, %s43
      %s157 = ssub.s32 %s32, %s39
      %s158 = sor.u32 %s156, %s157
      %p159 = scmp.eq.s32.totalorder %s158, 0
      %s161 = sadd.s32 %s160, 1
      %s162 = scalar_select %p159, %s160, %s161
      %p165 = pneg %p159
      %p166 = scmp.eq.s32.totalorder %s24, 1
      %p167 = por %p165, %p166
      %p168 = scmp.ne.s32.totalorder %s160, %s163
      %p169 = scmp.eq.s32.totalorder %s24, 0
      %p170 = por %p168, %p169
      %p171 = scmp.ne.s32.totalorder %s160, %s163
      %p172 = scmp.eq.s32.totalorder %s29, 1
      %p173 = por %p171, %p172
      %p174 = scmp.ne.s32.totalorder %s163, %s164
      %p175 = scmp.eq.s32.totalorder %s29, 0
      %p176 = por %p174, %p175
      %p177 = scmp.ne.s32.totalorder %s163, %s164
      %p178 = scmp.eq.s32.totalorder %s30, 1
      %p179 = por %p177, %p178
      %p181 = scmp.ne.s32.totalorder %s164, %s180
      %p182 = scmp.eq.s32.totalorder %s30, 0
      %p183 = por %p181, %p182
      %s184 = ssub.s32 %s31, %s43
      %s185 = ssub.s32 %s32, %s39
      %s186 = sor.u32 %s184, %s185
      %p187 = scmp.eq.s32.totalorder %s186, 0
      %s189 = sadd.s32 %s188, 1
      %s190 = scalar_select %p187, %s188, %s189
      %p193 = pneg %p187
      %p194 = scmp.eq.s32.totalorder %s24, 1
      %p195 = por %p193, %p194
      %p196 = scmp.ne.s32.totalorder %s188, %s191
      %p197 = scmp.eq.s32.totalorder %s24, 0
      %p198 = por %p196, %p197
      %p199 = scmp.ne.s32.totalorder %s188, %s191
      %p200 = scmp.eq.s32.totalorder %s29, 1
      %p201 = por %p199, %p200
      %p202 = scmp.ne.s32.totalorder %s191, %s192
      %p203 = scmp.eq.s32.totalorder %s29, 0
      %p204 = por %p202, %p203
      %p205 = scmp.ne.s32.totalorder %s191, %s192
      %p206 = scmp.eq.s32.totalorder %s30, 1
      %p207 = por %p205, %p206
      %p209 = scmp.ne.s32.totalorder %s192, %s208
      %p210 = scmp.eq.s32.totalorder %s30, 0
      %p211 = por %p209, %p210
      %p212 = scmp.le.s32.totalorder 1, %s24
      %p213 = scmp.lt.s32.totalorder %s24, 3
      %p214 = pnand %p212, %p213
      %p215 = pneg %p214
      // Predicated region
      $region9: #{tpu_custom_call.1} parent=5 // pred_check
        _
      $region10: #{tpu_custom_call.1} parent=5 // pred_check_branch
        %217 = sbr.rel (%p214) target = $region12
      $region11: #{tpu_custom_call.1} parent=5 // pred_region
        %s218 = ssub.s32 %s24, 1
      $region12: #{tpu_custom_call.1} parent=5 // pred_fallthru
        _
      %p219 = scmp.lt.s32.totalorder %s24, 2
      // Predicated region
      $region13: #{tpu_custom_call.1} parent=5 // pred_check
        %p220 = pneg %p219
      $region14: #{tpu_custom_call.1} parent=5 // pred_check_branch
        %222 = sbr.rel (%p220) target = $region16
      $region15: #{tpu_custom_call.1} parent=5 // pred_region
        // Predicated region
        $region17: #{tpu_custom_call.1} parent=15 // pred_check
          %p223 = pneg %p58
        $region18: #{tpu_custom_call.1} parent=15 // pred_check_branch
          %225 = sbr.rel (%p223) target = $region20
        $region19: #{tpu_custom_call.1} parent=15 // pred_region
          %s226 = sand.u32 %s48, 1
          %s227 = scalar_lea.sflag [#allocation3], %s226
          %s228 = sand.u32 %s48, 1
          %s229 = smul.addr %s228, 32
          %s230 = scalar_lea.vmem [#allocation2], %s229
          %s232 = ssub.s32 512, 512
          %233 = vsyncadd %s227, %s232
          %s234 = smul.addr %s31, 4
          %s235 = sadd.s32 %s32, %s234
          %s236 = smul.addr %s235, 128
          %s237 = scalar_lea.hbm %s0, %s236
          %s238 = sshll.u32 %s230, 4
          %s239 = int_to_ptr.vmem [resolvable:$true] %s238
          %244 = dma.hbm_to_vmem [thread:$0]  %s237, 512, %s239, %s227, 128, 128, 8
        $region20: #{tpu_custom_call.1} parent=15 // pred_fallthru
          _
        // Predicated region
        $region21: #{tpu_custom_call.1} parent=15 // pred_check
          %p245 = pneg %p86
        $region22: #{tpu_custom_call.1} parent=15 // pred_check_branch
          %247 = sbr.rel (%p245) target = $region24
        $region23: #{tpu_custom_call.1} parent=15 // pred_region
          %s248 = sand.u32 %s24, 1
          %s249 = scalar_lea.sflag [#allocation6], %s248
          %s250 = sand.u32 %s76, 1
          %s251 = smul.addr %s250, 32
          %s252 = scalar_lea.vmem [#allocation5], %s251
          %s254 = ssub.s32 512, 512
          %255 = vsyncadd %s249, %s254
          %s256 = smul.addr %s31, 4
          %s257 = sadd.s32 %s32, %s256
          %s258 = smul.addr %s257, 128
          %s259 = scalar_lea.hbm %s1, %s258
          %s260 = sshll.u32 %s252, 4
          %s261 = int_to_ptr.vmem [resolvable:$true] %s260
          %266 = dma.hbm_to_vmem [thread:$0]  %s259, 512, %s261, %s249, 128, 128, 8
        $region24: #{tpu_custom_call.1} parent=15 // pred_fallthru
          _
        // Predicated region
        $region25: #{tpu_custom_call.1} parent=15 // pred_check
          %p267 = pneg %p114
        $region26: #{tpu_custom_call.1} parent=15 // pred_check_branch
          %269 = sbr.rel (%p267) target = $region28
        $region27: #{tpu_custom_call.1} parent=15 // pred_region
          %s270 = sand.u32 %s24, 1
          %s271 = scalar_lea.sflag [#allocation6], %s270
          %s272 = sand.u32 %s104, 1
          %s273 = smul.addr %s272, 8
          %s274 = scalar_lea.vmem [#allocation7], %s273
          %s276 = ssub.s32 128, 128
          %277 = vsyncadd %s271, %s276
          %s278 = sadd.s32 %s32, %s31
          %s279 = smul.addr %s278, 128
          %s280 = scalar_lea.hbm %s2, %s279
          %s282 = sshll.u32 %s274, 4
          %s283 = int_to_ptr.vmem [resolvable:$true] %s282
          %285 = dma.hbm_to_vmem [thread:$0]  %s280, 128, %s283, %s271
        $region28: #{tpu_custom_call.1} parent=15 // pred_fallthru
          _
      $region16: #{tpu_custom_call.1} parent=5 // pred_fallthru
        _
      %p286 = scmp.le.s32.totalorder 1, %s24
      %p287 = scmp.lt.s32.totalorder %s24, 3
      %p288 = pnand %p286, %p287
      %p289 = pneg %p288
      // Predicated region
      $region29: #{tpu_custom_call.1} parent=5 // pred_check
        _
      $region30: #{tpu_custom_call.1} parent=5 // pred_check_branch
        %291 = sbr.rel (%p288) target = $region32
      $region31: #{tpu_custom_call.1} parent=5 // pred_region
        %s292 = ssub.s32 %s24, 1
        %s293 = sand.u32 %s51, 1
        %s294 = scalar_lea.sflag [#allocation3], %s293
        %s295 = sand.u32 %s51, 1
        %s296 = smul.addr %s295, 32
        %s297 = scalar_lea.vmem [#allocation2], %s296
        // Predicated region
        $region33: #{tpu_custom_call.1} parent=31 // pred_check
          %p298 = pneg %p64
        $region34: #{tpu_custom_call.1} parent=31 // pred_check_branch
          %300 = sbr.rel (%p298) target = $region36
        $region35: #{tpu_custom_call.1} parent=31 // pred_region
          %301 = dma.done %s294, 512
        $region36: #{tpu_custom_call.1} parent=31 // pred_fallthru
          _
        %s302 = sand.u32 %s29, 1
        %s303 = scalar_lea.sflag [#allocation6], %s302
        %s304 = sand.u32 %s79, 1
        %s305 = smul.addr %s304, 32
        %s306 = scalar_lea.vmem [#allocation5], %s305
        // Predicated region
        $region37: #{tpu_custom_call.1} parent=31 // pred_check
          %p307 = pneg %p92
        $region38: #{tpu_custom_call.1} parent=31 // pred_check_branch
          %309 = sbr.rel (%p307) target = $region40
        $region39: #{tpu_custom_call.1} parent=31 // pred_region
          %310 = dma.done %s303, 512
        $region40: #{tpu_custom_call.1} parent=31 // pred_fallthru
          _
        %s311 = sand.u32 %s29, 1
        %s312 = scalar_lea.sflag [#allocation6], %s311
        %s313 = sand.u32 %s107, 1
        %s314 = smul.addr %s313, 8
        %s315 = scalar_lea.vmem [#allocation7], %s314
        // Predicated region
        $region41: #{tpu_custom_call.1} parent=31 // pred_check
          %p316 = pneg %p120
        $region42: #{tpu_custom_call.1} parent=31 // pred_check_branch
          %318 = sbr.rel (%p316) target = $region44
        $region43: #{tpu_custom_call.1} parent=31 // pred_region
          %319 = dma.done %s312, 128
        $region44: #{tpu_custom_call.1} parent=31 // pred_fallthru
          _
        %s320 = sand.u32 %s51, 1
        %s321 = scalar_lea.sflag [#allocation3], %s320
        %s322 = sand.u32 %s51, 1
        %s323 = smul.addr %s322, 32
        %s324 = scalar_lea.vmem [#allocation2], %s323
        %p325 = pneg %p64
        %p326 = pneg %p61
        %s327 = sand.u32 %s29, 1
        %s328 = scalar_lea.sflag [#allocation6], %s327
        %s329 = sand.u32 %s79, 1
        %s330 = smul.addr %s329, 32
        %s331 = scalar_lea.vmem [#allocation5], %s330
        %p332 = pneg %p92
        %p333 = pneg %p89
        %s334 = sand.u32 %s29, 1
        %s335 = scalar_lea.sflag [#allocation6], %s334
        %s336 = sand.u32 %s107, 1
        %s337 = smul.addr %s336, 8
        %s338 = scalar_lea.vmem [#allocation7], %s337
        %p339 = pneg %p120
        %p340 = pneg %p117
        %p341 = pneg %p148
        %p342 = pneg %p145
        %s343 = sand.u32 %s135, 1
        %s344 = scalar_lea.sflag [#allocation4], %s343
        %s345 = sand.u32 %s135, 1
        %s346 = smul.addr %s345, 8
        %s347 = scalar_lea.vmem [#allocation8], %s346
        %p348 = pneg %p176
        %p349 = pneg %p173
        %s350 = sand.u32 %s29, 1
        %s351 = scalar_lea.sflag [#allocation10], %s350
        %s352 = sand.u32 %s163, 1
        %s353 = smul.addr %s352, 8
        %s354 = scalar_lea.vmem [#allocation9], %s353
        %p355 = pneg %p204
        %p356 = pneg %p201
        %s357 = sand.u32 %s29, 1
        %s358 = scalar_lea.sflag [#allocation10], %s357
        %s359 = sand.u32 %s191, 1
        %s360 = smul.addr %s359, 8
        %s361 = scalar_lea.vmem [#allocation11], %s360
        %v362 = vld [vmem:[%s315] sm:$0xff]
        %vm363 = vcmp.eq.s32.totalorder %v362, 0
        %vm364 = vcmp.eq.s32.totalorder %v362, 1
        %vm365 = vcmp.eq.s32.totalorder %v362, 2
        %vm366 = vcmp.eq.s32.totalorder %v362, 3
        %v367 = vsel %vm363, 4096.0, 1.0
        %v368 = vsel %vm364, 4096.0, 1.0
        %v369 = vsel %vm365, 4096.0, 1.0
        %v370 = vsel %vm366, 4096.0, 1.0
        %v371 = vsel %vm363, 1, 0
        %v372 = vcvt.s32.f32 %v371
        %vm373 = vcmask 64512
        %v375 = vsel %vm373, 1.0, 0
        %377 = vmatprep.subr.mxu0 0.0
        %378 = vmatpush1.msra.mxu0 %v372
        %379 = vmatprep.subr.mxu0 0.0
        %380 = vmatpush1.msra.mxu0 0.0
        %381 = vmatprep.subr.mxu0 0.0
        %382 = vmatpush1.msra.mxu0 0.0
        %383 = vmatprep.subr.mxu0 0.0
        %384 = vmatpush1.msra.mxu0 0.0
        %385 = vmatprep.subr.mxu0 0.0
        %386 = vmatpush1.msra.mxu0 0.0
        %387 = vmatprep.subr.mxu0 0.0
        %388 = vmatpush1.msra.mxu0 0.0
        %389 = vmatprep.subr.mxu0 0.0
        %390 = vmatpush1.msra.mxu0 0.0
        %391 = vmatprep.subr.mxu0 0.0
        %392 = vmatpush1.msra.mxu0 0.0
        %393 = vmatprep.subr.mxu0 0.0
        %394 = vmatpush1.msra.mxu0 0.0
        %395 = vmatprep.subr.mxu0 0.0
        %396 = vmatpush1.msra.mxu0 0.0
        %397 = vmatprep.subr.mxu0 0.0
        %398 = vmatpush1.msra.mxu0 0.0
        %399 = vmatprep.subr.mxu0 0.0
        %400 = vmatpush1.msra.mxu0 0.0
        %401 = vmatprep.subr.mxu0 0.0
        %402 = vmatpush1.msra.mxu0 0.0
        %403 = vmatprep.subr.mxu0 0.0
        %404 = vmatpush1.msra.mxu0 0.0
        %405 = vmatprep.subr.mxu0 0.0
        %406 = vmatpush1.msra.mxu0 0.0
        %407 = vmatprep.subr.mxu0 0.0
        %408 = vmatpush1.msra.mxu0 0.0
        %409 = vmatprep.subr.mxu0 0.0
        %410 = vmatpush1.msra.mxu0 0.0
        %411 = vmatprep.subr.mxu0 0.0
        %412 = vmatpush1.msra.mxu0 0.0
        %413 = vmatprep.subr.mxu0 0.0
        %414 = vmatpush1.msra.mxu0 0.0
        %415 = vmatprep.subr.mxu0 0.0
        %416 = vmatpush1.msra.mxu0 0.0
        %417 = vmatprep.subr.mxu0 0.0
        %418 = vmatpush1.msra.mxu0 0.0
        %419 = vmatprep.subr.mxu0 0.0
        %420 = vmatpush1.msra.mxu0 0.0
        %421 = vmatprep.subr.mxu0 0.0
        %422 = vmatpush1.msra.mxu0 0.0
        %423 = vmatprep.subr.mxu0 0.0
        %424 = vmatpush1.msra.mxu0 0.0
        %425 = vmatprep.subr.mxu0 0.0
        %426 = vmatpush1.msra.mxu0 0.0
        %427 = vmatprep.subr.mxu0 0.0
        %428 = vmatpush1.msra.mxu0 0.0
        %429 = vmatprep.subr.mxu0 0.0
        %430 = vmatpush1.msra.mxu0 0.0
        %431 = vmatprep.subr.mxu0 0.0
        %432 = vmatpush1.msra.mxu0 0.0
        %433 = vmatprep.subr.mxu0 0.0
        %434 = vmatpush1.msra.mxu0 0.0
        %435 = vmatprep.subr.mxu0 0.0
        %436 = vmatpush1.msra.mxu0 0.0
        %437 = vmatprep.subr.mxu0 0.0
        %438 = vmatpush1.msra.mxu0 0.0
        %439 = vmatprep.subr.mxu0 0.0
        %440 = vmatpush1.msra.mxu0 0.0
        %441 = vmatprep.mubr.f32.mxu0 0.0
        %442 = vmatmul.mubr.f32.gmra.mrb[0].mxu0 %v375
        %v443 = vpop.f32.mrb[0].mxu0
        %v444 = vadd.f32 0.0, %v443
        %v445 = vpop.f32.mrb[0].mxu0
        %446 = vdwg.mxu0
        %447 = vst [vmem:[%s361] sm:$0x1] %v444
        %v448 = vsel %vm364, 1, 0
        %v449 = vcvt.s32.f32 %v448
        %450 = vmatprep.subr.mxu0 0.0
        %451 = vmatpush1.msra.mxu0 %v449
        %452 = vmatprep.subr.mxu0 0.0
        %453 = vmatpush1.msra.mxu0 0.0
        %454 = vmatprep.subr.mxu0 0.0
        %455 = vmatpush1.msra.mxu0 0.0
        %456 = vmatprep.subr.mxu0 0.0
        %457 = vmatpush1.msra.mxu0 0.0
        %458 = vmatprep.subr.mxu0 0.0
        %459 = vmatpush1.msra.mxu0 0.0
        %460 = vmatprep.subr.mxu0 0.0
        %461 = vmatpush1.msra.mxu0 0.0
        %462 = vmatprep.subr.mxu0 0.0
        %463 = vmatpush1.msra.mxu0 0.0
        %464 = vmatprep.subr.mxu0 0.0
        %465 = vmatpush1.msra.mxu0 0.0
        %466 = vmatprep.subr.mxu0 0.0
        %467 = vmatpush1.msra.mxu0 0.0
        %468 = vmatprep.subr.mxu0 0.0
        %469 = vmatpush1.msra.mxu0 0.0
        %470 = vmatprep.subr.mxu0 0.0
        %471 = vmatpush1.msra.mxu0 0.0
        %472 = vmatprep.subr.mxu0 0.0
        %473 = vmatpush1.msra.mxu0 0.0
        %474 = vmatprep.subr.mxu0 0.0
        %475 = vmatpush1.msra.mxu0 0.0
        %476 = vmatprep.subr.mxu0 0.0
        %477 = vmatpush1.msra.mxu0 0.0
        %478 = vmatprep.subr.mxu0 0.0
        %479 = vmatpush1.msra.mxu0 0.0
        %480 = vmatprep.subr.mxu0 0.0
        %481 = vmatpush1.msra.mxu0 0.0
        %482 = vmatprep.subr.mxu0 0.0
        %483 = vmatpush1.msra.mxu0 0.0
        %484 = vmatprep.subr.mxu0 0.0
        %485 = vmatpush1.msra.mxu0 0.0
        %486 = vmatprep.subr.mxu0 0.0
        %487 = vmatpush1.msra.mxu0 0.0
        %488 = vmatprep.subr.mxu0 0.0
        %489 = vmatpush1.msra.mxu0 0.0
        %490 = vmatprep.subr.mxu0 0.0
        %491 = vmatpush1.msra.mxu0 0.0
        %492 = vmatprep.subr.mxu0 0.0
        %493 = vmatpush1.msra.mxu0 0.0
        %494 = vmatprep.subr.mxu0 0.0
        %495 = vmatpush1.msra.mxu0 0.0
        %496 = vmatprep.subr.mxu0 0.0
        %497 = vmatpush1.msra.mxu0 0.0
        %498 = vmatprep.subr.mxu0 0.0
        %499 = vmatpush1.msra.mxu0 0.0
        %500 = vmatprep.subr.mxu0 0.0
        %501 = vmatpush1.msra.mxu0 0.0
        %502 = vmatprep.subr.mxu0 0.0
        %503 = vmatpush1.msra.mxu0 0.0
        %504 = vmatprep.subr.mxu0 0.0
        %505 = vmatpush1.msra.mxu0 0.0
        %506 = vmatprep.subr.mxu0 0.0
        %507 = vmatpush1.msra.mxu0 0.0
        %508 = vmatprep.subr.mxu0 0.0
        %509 = vmatpush1.msra.mxu0 0.0
        %510 = vmatprep.subr.mxu0 0.0
        %511 = vmatpush1.msra.mxu0 0.0
        %512 = vmatprep.subr.mxu0 0.0
        %513 = vmatpush1.msra.mxu0 0.0
        %514 = vmatprep.mubr.f32.mxu0 0.0
        %515 = vmatmul.mubr.f32.gmra.mrb[0].mxu0 %v375
        %v516 = vpop.f32.mrb[0].mxu0
        %v517 = vadd.f32 0.0, %v516
        %v518 = vpop.f32.mrb[0].mxu0
        %519 = vdwg.mxu0
        %520 = vst [vmem:[%s361 + $0x1] sm:$0x1] %v517
        %v521 = vsel %vm365, 1, 0
        %v522 = vcvt.s32.f32 %v521
        %523 = vmatprep.subr.mxu0 0.0
        %524 = vmatpush1.msra.mxu0 %v522
        %525 = vmatprep.subr.mxu0 0.0
        %526 = vmatpush1.msra.mxu0 0.0
        %527 = vmatprep.subr.mxu0 0.0
        %528 = vmatpush1.msra.mxu0 0.0
        %529 = vmatprep.subr.mxu0 0.0
        %530 = vmatpush1.msra.mxu0 0.0
        %531 = vmatprep.subr.mxu0 0.0
        %532 = vmatpush1.msra.mxu0 0.0
        %533 = vmatprep.subr.mxu0 0.0
        %534 = vmatpush1.msra.mxu0 0.0
        %535 = vmatprep.subr.mxu0 0.0
        %536 = vmatpush1.msra.mxu0 0.0
        %537 = vmatprep.subr.mxu0 0.0
        %538 = vmatpush1.msra.mxu0 0.0
        %539 = vmatprep.subr.mxu0 0.0
        %540 = vmatpush1.msra.mxu0 0.0
        %541 = vmatprep.subr.mxu0 0.0
        %542 = vmatpush1.msra.mxu0 0.0
        %543 = vmatprep.subr.mxu0 0.0
        %544 = vmatpush1.msra.mxu0 0.0
        %545 = vmatprep.subr.mxu0 0.0
        %546 = vmatpush1.msra.mxu0 0.0
        %547 = vmatprep.subr.mxu0 0.0
        %548 = vmatpush1.msra.mxu0 0.0
        %549 = vmatprep.subr.mxu0 0.0
        %550 = vmatpush1.msra.mxu0 0.0
        %551 = vmatprep.subr.mxu0 0.0
        %552 = vmatpush1.msra.mxu0 0.0
        %553 = vmatprep.subr.mxu0 0.0
        %554 = vmatpush1.msra.mxu0 0.0
        %555 = vmatprep.subr.mxu0 0.0
        %556 = vmatpush1.msra.mxu0 0.0
        %557 = vmatprep.subr.mxu0 0.0
        %558 = vmatpush1.msra.mxu0 0.0
        %559 = vmatprep.subr.mxu0 0.0
        %560 = vmatpush1.msra.mxu0 0.0
        %561 = vmatprep.subr.mxu0 0.0
        %562 = vmatpush1.msra.mxu0 0.0
        %563 = vmatprep.subr.mxu0 0.0
        %564 = vmatpush1.msra.mxu0 0.0
        %565 = vmatprep.subr.mxu0 0.0
        %566 = vmatpush1.msra.mxu0 0.0
        %567 = vmatprep.subr.mxu0 0.0
        %568 = vmatpush1.msra.mxu0 0.0
        %569 = vmatprep.subr.mxu0 0.0
        %570 = vmatpush1.msra.mxu0 0.0
        %571 = vmatprep.subr.mxu0 0.0
        %572 = vmatpush1.msra.mxu0 0.0
        %573 = vmatprep.subr.mxu0 0.0
        %574 = vmatpush1.msra.mxu0 0.0
        %575 = vmatprep.subr.mxu0 0.0
        %576 = vmatpush1.msra.mxu0 0.0
        %577 = vmatprep.subr.mxu0 0.0
        %578 = vmatpush1.msra.mxu0 0.0
        %579 = vmatprep.subr.mxu0 0.0
        %580 = vmatpush1.msra.mxu0 0.0
        %581 = vmatprep.subr.mxu0 0.0
        %582 = vmatpush1.msra.mxu0 0.0
        %583 = vmatprep.subr.mxu0 0.0
        %584 = vmatpush1.msra.mxu0 0.0
        %585 = vmatprep.subr.mxu0 0.0
        %586 = vmatpush1.msra.mxu0 0.0
        %587 = vmatprep.mubr.f32.mxu0 0.0
        %588 = vmatmul.mubr.f32.gmra.mrb[0].mxu0 %v375
        %v589 = vpop.f32.mrb[0].mxu0
        %v590 = vadd.f32 0.0, %v589
        %v591 = vpop.f32.mrb[0].mxu0
        %592 = vdwg.mxu0
        %593 = vst [vmem:[%s361 + $0x2] sm:$0x1] %v590
        %v594 = vsel %vm366, 1, 0
        %v595 = vcvt.s32.f32 %v594
        %596 = vmatprep.subr.mxu0 0.0
        %597 = vmatpush1.msra.mxu0 %v595
        %598 = vmatprep.subr.mxu0 0.0
        %599 = vmatpush1.msra.mxu0 0.0
        %600 = vmatprep.subr.mxu0 0.0
        %601 = vmatpush1.msra.mxu0 0.0
        %602 = vmatprep.subr.mxu0 0.0
        %603 = vmatpush1.msra.mxu0 0.0
        %604 = vmatprep.subr.mxu0 0.0
        %605 = vmatpush1.msra.mxu0 0.0
        %606 = vmatprep.subr.mxu0 0.0
        %607 = vmatpush1.msra.mxu0 0.0
        %608 = vmatprep.subr.mxu0 0.0
        %609 = vmatpush1.msra.mxu0 0.0
        %610 = vmatprep.subr.mxu0 0.0
        %611 = vmatpush1.msra.mxu0 0.0
        %612 = vmatprep.subr.mxu0 0.0
        %613 = vmatpush1.msra.mxu0 0.0
        %614 = vmatprep.subr.mxu0 0.0
        %615 = vmatpush1.msra.mxu0 0.0
        %616 = vmatprep.subr.mxu0 0.0
        %617 = vmatpush1.msra.mxu0 0.0
        %618 = vmatprep.subr.mxu0 0.0
        %619 = vmatpush1.msra.mxu0 0.0
        %620 = vmatprep.subr.mxu0 0.0
        %621 = vmatpush1.msra.mxu0 0.0
        %622 = vmatprep.subr.mxu0 0.0
        %623 = vmatpush1.msra.mxu0 0.0
        %624 = vmatprep.subr.mxu0 0.0
        %625 = vmatpush1.msra.mxu0 0.0
        %626 = vmatprep.subr.mxu0 0.0
        %627 = vmatpush1.msra.mxu0 0.0
        %628 = vmatprep.subr.mxu0 0.0
        %629 = vmatpush1.msra.mxu0 0.0
        %630 = vmatprep.subr.mxu0 0.0
        %631 = vmatpush1.msra.mxu0 0.0
        %632 = vmatprep.subr.mxu0 0.0
        %633 = vmatpush1.msra.mxu0 0.0
        %634 = vmatprep.subr.mxu0 0.0
        %635 = vmatpush1.msra.mxu0 0.0
        %636 = vmatprep.subr.mxu0 0.0
        %637 = vmatpush1.msra.mxu0 0.0
        %638 = vmatprep.subr.mxu0 0.0
        %639 = vmatpush1.msra.mxu0 0.0
        %640 = vmatprep.subr.mxu0 0.0
        %641 = vmatpush1.msra.mxu0 0.0
        %642 = vmatprep.subr.mxu0 0.0
        %643 = vmatpush1.msra.mxu0 0.0
        %644 = vmatprep.subr.mxu0 0.0
        %645 = vmatpush1.msra.mxu0 0.0
        %646 = vmatprep.subr.mxu0 0.0
        %647 = vmatpush1.msra.mxu0 0.0
        %648 = vmatprep.subr.mxu0 0.0
        %649 = vmatpush1.msra.mxu0 0.0
        %650 = vmatprep.subr.mxu0 0.0
        %651 = vmatpush1.msra.mxu0 0.0
        %652 = vmatprep.subr.mxu0 0.0
        %653 = vmatpush1.msra.mxu0 0.0
        %654 = vmatprep.subr.mxu0 0.0
        %655 = vmatpush1.msra.mxu0 0.0
        %656 = vmatprep.subr.mxu0 0.0
        %657 = vmatpush1.msra.mxu0 0.0
        %658 = vmatprep.subr.mxu0 0.0
        %659 = vmatpush1.msra.mxu0 0.0
        %660 = vmatprep.mubr.f32.mxu0 0.0
        %661 = vmatmul.mubr.f32.gmra.mrb[0].mxu0 %v375
        %v662 = vpop.f32.mrb[0].mxu0
        %v663 = vadd.f32 0.0, %v662
        %v664 = vpop.f32.mrb[0].mxu0
        %665 = vdwg.mxu0
        %666 = vst [vmem:[%s361 + $0x3] sm:$0x1] %v663
        %v667 = vld [vmem:[%s297] sm:$0xff]
        %s668 = scalar_lea.vmem %s297, 8 [#allocation2]
        %v669 = vld [vmem:[%s668] sm:$0xff]
        %s670 = scalar_lea.vmem %s297, 16 [#allocation2]
        %v671 = vld [vmem:[%s670] sm:$0xff]
        %s672 = scalar_lea.vmem %s297, 24 [#allocation2]
        %v673 = vld [vmem:[%s672] sm:$0xff]
        %vm674 = vcmp.gt.f32.partialorder %v669, %v667
        %v675 = vsel %vm674, %v669, %v667
        %v676 = vsel %vm674, 1, 0
        %vm677 = vcmp.gt.f32.partialorder %v671, %v675
        %v678 = vsel %vm677, %v671, %v675
        %v679 = vsel %vm677, 2, %v676
        %vm680 = vcmp.gt.f32.partialorder %v673, %v678
        %v681 = vsel %vm680, %v673, %v678
        %v682 = vsel %vm680, 3, %v679
        %v683 = vsub.f32 %v667, %v681
        %v684 = vsub.f32 %v669, %v681
        %v685 = vsub.f32 %v671, %v681
        %v686 = vsub.f32 %v673, %v681
        %v687 = vmul.f32 %v683, 1.442695
        %v688 = vpow.pop %v687
        %v689 = vmul.f32 %v684, 1.442695
        %v690 = vpow.pop %v689
        %v691 = vadd.f32 %v688, %v690
        %v692 = vmul.f32 %v685, 1.442695
        %v693 = vpow.pop %v692
        %v694 = vadd.f32 %v691, %v693
        %v695 = vmul.f32 %v686, 1.442695
        %v696 = vpow.pop %v695
        %v697 = vadd.f32 %v694, %v696
        %v698 = vlog2.pop %v697
        %v699 = vmul.f32 %v698, 0.6931472
        %v700 = vsel %vm363, %v683, 0.0
        %v701 = vsel %vm364, %v684, %v700
        %v702 = vsel %vm365, %v685, %v701
        %v703 = vsel %vm366, %v686, %v702
        %v704 = vsub.f32 %v699, %v703
        %vm705 = vcmp.eq.s32.totalorder %v682, 0
        %v706 = vsel %vm705, %v367, 0.0
        %707 = vmatprep.subr.mxu0 0.0
        %708 = vmatpush1.msra.mxu0 %v706
        %709 = vmatprep.subr.mxu0 0.0
        %710 = vmatpush1.msra.mxu0 0.0
        %711 = vmatprep.subr.mxu0 0.0
        %712 = vmatpush1.msra.mxu0 0.0
        %713 = vmatprep.subr.mxu0 0.0
        %714 = vmatpush1.msra.mxu0 0.0
        %715 = vmatprep.subr.mxu0 0.0
        %716 = vmatpush1.msra.mxu0 0.0
        %717 = vmatprep.subr.mxu0 0.0
        %718 = vmatpush1.msra.mxu0 0.0
        %719 = vmatprep.subr.mxu0 0.0
        %720 = vmatpush1.msra.mxu0 0.0
        %721 = vmatprep.subr.mxu0 0.0
        %722 = vmatpush1.msra.mxu0 0.0
        %723 = vmatprep.subr.mxu0 0.0
        %724 = vmatpush1.msra.mxu0 0.0
        %725 = vmatprep.subr.mxu0 0.0
        %726 = vmatpush1.msra.mxu0 0.0
        %727 = vmatprep.subr.mxu0 0.0
        %728 = vmatpush1.msra.mxu0 0.0
        %729 = vmatprep.subr.mxu0 0.0
        %730 = vmatpush1.msra.mxu0 0.0
        %731 = vmatprep.subr.mxu0 0.0
        %732 = vmatpush1.msra.mxu0 0.0
        %733 = vmatprep.subr.mxu0 0.0
        %734 = vmatpush1.msra.mxu0 0.0
        %735 = vmatprep.subr.mxu0 0.0
        %736 = vmatpush1.msra.mxu0 0.0
        %737 = vmatprep.subr.mxu0 0.0
        %738 = vmatpush1.msra.mxu0 0.0
        %739 = vmatprep.subr.mxu0 0.0
        %740 = vmatpush1.msra.mxu0 0.0
        %741 = vmatprep.subr.mxu0 0.0
        %742 = vmatpush1.msra.mxu0 0.0
        %743 = vmatprep.subr.mxu0 0.0
        %744 = vmatpush1.msra.mxu0 0.0
        %745 = vmatprep.subr.mxu0 0.0
        %746 = vmatpush1.msra.mxu0 0.0
        %747 = vmatprep.subr.mxu0 0.0
        %748 = vmatpush1.msra.mxu0 0.0
        %749 = vmatprep.subr.mxu0 0.0
        %750 = vmatpush1.msra.mxu0 0.0
        %751 = vmatprep.subr.mxu0 0.0
        %752 = vmatpush1.msra.mxu0 0.0
        %753 = vmatprep.subr.mxu0 0.0
        %754 = vmatpush1.msra.mxu0 0.0
        %755 = vmatprep.subr.mxu0 0.0
        %756 = vmatpush1.msra.mxu0 0.0
        %757 = vmatprep.subr.mxu0 0.0
        %758 = vmatpush1.msra.mxu0 0.0
        %759 = vmatprep.subr.mxu0 0.0
        %760 = vmatpush1.msra.mxu0 0.0
        %761 = vmatprep.subr.mxu0 0.0
        %762 = vmatpush1.msra.mxu0 0.0
        %763 = vmatprep.subr.mxu0 0.0
        %764 = vmatpush1.msra.mxu0 0.0
        %765 = vmatprep.subr.mxu0 0.0
        %766 = vmatpush1.msra.mxu0 0.0
        %767 = vmatprep.subr.mxu0 0.0
        %768 = vmatpush1.msra.mxu0 0.0
        %769 = vmatprep.subr.mxu0 0.0
        %770 = vmatpush1.msra.mxu0 0.0
        %771 = vmatprep.mubr.f32.mxu0 0.0
        %772 = vmatmul.mubr.f32.gmra.mrb[0].mxu0 %v375
        %v773 = vpop.f32.mrb[0].mxu0
        %v774 = vadd.f32 0.0, %v773
        %v775 = vpop.f32.mrb[0].mxu0
        %776 = vdwg.mxu0
        %777 = vst [vmem:[%s347] sm:$0x1] %v774
        %vm778 = vcmp.eq.s32.totalorder %v682, 1
        %v779 = vsel %vm778, %v368, 0.0
        %780 = vmatprep.subr.mxu0 0.0
        %781 = vmatpush1.msra.mxu0 %v779
        %782 = vmatprep.subr.mxu0 0.0
        %783 = vmatpush1.msra.mxu0 0.0
        %784 = vmatprep.subr.mxu0 0.0
        %785 = vmatpush1.msra.mxu0 0.0
        %786 = vmatprep.subr.mxu0 0.0
        %787 = vmatpush1.msra.mxu0 0.0
        %788 = vmatprep.subr.mxu0 0.0
        %789 = vmatpush1.msra.mxu0 0.0
        %790 = vmatprep.subr.mxu0 0.0
        %791 = vmatpush1.msra.mxu0 0.0
        %792 = vmatprep.subr.mxu0 0.0
        %793 = vmatpush1.msra.mxu0 0.0
        %794 = vmatprep.subr.mxu0 0.0
        %795 = vmatpush1.msra.mxu0 0.0
        %796 = vmatprep.subr.mxu0 0.0
        %797 = vmatpush1.msra.mxu0 0.0
        %798 = vmatprep.subr.mxu0 0.0
        %799 = vmatpush1.msra.mxu0 0.0
        %800 = vmatprep.subr.mxu0 0.0
        %801 = vmatpush1.msra.mxu0 0.0
        %802 = vmatprep.subr.mxu0 0.0
        %803 = vmatpush1.msra.mxu0 0.0
        %804 = vmatprep.subr.mxu0 0.0
        %805 = vmatpush1.msra.mxu0 0.0
        %806 = vmatprep.subr.mxu0 0.0
        %807 = vmatpush1.msra.mxu0 0.0
        %808 = vmatprep.subr.mxu0 0.0
        %809 = vmatpush1.msra.mxu0 0.0
        %810 = vmatprep.subr.mxu0 0.0
        %811 = vmatpush1.msra.mxu0 0.0
        %812 = vmatprep.subr.mxu0 0.0
        %813 = vmatpush1.msra.mxu0 0.0
        %814 = vmatprep.subr.mxu0 0.0
        %815 = vmatpush1.msra.mxu0 0.0
        %816 = vmatprep.subr.mxu0 0.0
        %817 = vmatpush1.msra.mxu0 0.0
        %818 = vmatprep.subr.mxu0 0.0
        %819 = vmatpush1.msra.mxu0 0.0
        %820 = vmatprep.subr.mxu0 0.0
        %821 = vmatpush1.msra.mxu0 0.0
        %822 = vmatprep.subr.mxu0 0.0
        %823 = vmatpush1.msra.mxu0 0.0
        %824 = vmatprep.subr.mxu0 0.0
        %825 = vmatpush1.msra.mxu0 0.0
        %826 = vmatprep.subr.mxu0 0.0
        %827 = vmatpush1.msra.mxu0 0.0
        %828 = vmatprep.subr.mxu0 0.0
        %829 = vmatpush1.msra.mxu0 0.0
        %830 = vmatprep.subr.mxu0 0.0
        %831 = vmatpush1.msra.mxu0 0.0
        %832 = vmatprep.subr.mxu0 0.0
        %833 = vmatpush1.msra.mxu0 0.0
        %834 = vmatprep.subr.mxu0 0.0
        %835 = vmatpush1.msra.mxu0 0.0
        %836 = vmatprep.subr.mxu0 0.0
        %837 = vmatpush1.msra.mxu0 0.0
        %838 = vmatprep.subr.mxu0 0.0
        %839 = vmatpush1.msra.mxu0 0.0
        %840 = vmatprep.subr.mxu0 0.0
        %841 = vmatpush1.msra.mxu0 0.0
        %842 = vmatprep.subr.mxu0 0.0
        %843 = vmatpush1.msra.mxu0 0.0
        %844 = vmatprep.mubr.f32.mxu0 0.0
        %845 = vmatmul.mubr.f32.gmra.mrb[0].mxu0 %v375
        %v846 = vpop.f32.mrb[0].mxu0
        %v847 = vadd.f32 0.0, %v846
        %v848 = vpop.f32.mrb[0].mxu0
        %849 = vdwg.mxu0
        %850 = vst [vmem:[%s347 + $0x1] sm:$0x1] %v847
        %vm851 = vcmp.eq.s32.totalorder %v682, 2
        %v852 = vsel %vm851, %v369, 0.0
        %853 = vmatprep.subr.mxu0 0.0
        %854 = vmatpush1.msra.mxu0 %v852
        %855 = vmatprep.subr.mxu0 0.0
        %856 = vmatpush1.msra.mxu0 0.0
        %857 = vmatprep.subr.mxu0 0.0
        %858 = vmatpush1.msra.mxu0 0.0
        %859 = vmatprep.subr.mxu0 0.0
        %860 = vmatpush1.msra.mxu0 0.0
        %861 = vmatprep.subr.mxu0 0.0
        %862 = vmatpush1.msra.mxu0 0.0
        %863 = vmatprep.subr.mxu0 0.0
        %864 = vmatpush1.msra.mxu0 0.0
        %865 = vmatprep.subr.mxu0 0.0
        %866 = vmatpush1.msra.mxu0 0.0
        %867 = vmatprep.subr.mxu0 0.0
        %868 = vmatpush1.msra.mxu0 0.0
        %869 = vmatprep.subr.mxu0 0.0
        %870 = vmatpush1.msra.mxu0 0.0
        %871 = vmatprep.subr.mxu0 0.0
        %872 = vmatpush1.msra.mxu0 0.0
        %873 = vmatprep.subr.mxu0 0.0
        %874 = vmatpush1.msra.mxu0 0.0
        %875 = vmatprep.subr.mxu0 0.0
        %876 = vmatpush1.msra.mxu0 0.0
        %877 = vmatprep.subr.mxu0 0.0
        %878 = vmatpush1.msra.mxu0 0.0
        %879 = vmatprep.subr.mxu0 0.0
        %880 = vmatpush1.msra.mxu0 0.0
        %881 = vmatprep.subr.mxu0 0.0
        %882 = vmatpush1.msra.mxu0 0.0
        %883 = vmatprep.subr.mxu0 0.0
        %884 = vmatpush1.msra.mxu0 0.0
        %885 = vmatprep.subr.mxu0 0.0
        %886 = vmatpush1.msra.mxu0 0.0
        %887 = vmatprep.subr.mxu0 0.0
        %888 = vmatpush1.msra.mxu0 0.0
        %889 = vmatprep.subr.mxu0 0.0
        %890 = vmatpush1.msra.mxu0 0.0
        %891 = vmatprep.subr.mxu0 0.0
        %892 = vmatpush1.msra.mxu0 0.0
        %893 = vmatprep.subr.mxu0 0.0
        %894 = vmatpush1.msra.mxu0 0.0
        %895 = vmatprep.subr.mxu0 0.0
        %896 = vmatpush1.msra.mxu0 0.0
        %897 = vmatprep.subr.mxu0 0.0
        %898 = vmatpush1.msra.mxu0 0.0
        %899 = vmatprep.subr.mxu0 0.0
        %900 = vmatpush1.msra.mxu0 0.0
        %901 = vmatprep.subr.mxu0 0.0
        %902 = vmatpush1.msra.mxu0 0.0
        %903 = vmatprep.subr.mxu0 0.0
        %904 = vmatpush1.msra.mxu0 0.0
        %905 = vmatprep.subr.mxu0 0.0
        %906 = vmatpush1.msra.mxu0 0.0
        %907 = vmatprep.subr.mxu0 0.0
        %908 = vmatpush1.msra.mxu0 0.0
        %909 = vmatprep.subr.mxu0 0.0
        %910 = vmatpush1.msra.mxu0 0.0
        %911 = vmatprep.subr.mxu0 0.0
        %912 = vmatpush1.msra.mxu0 0.0
        %913 = vmatprep.subr.mxu0 0.0
        %914 = vmatpush1.msra.mxu0 0.0
        %915 = vmatprep.subr.mxu0 0.0
        %916 = vmatpush1.msra.mxu0 0.0
        %917 = vmatprep.mubr.f32.mxu0 0.0
        %918 = vmatmul.mubr.f32.gmra.mrb[0].mxu0 %v375
        %v919 = vpop.f32.mrb[0].mxu0
        %v920 = vadd.f32 0.0, %v919
        %v921 = vpop.f32.mrb[0].mxu0
        %922 = vdwg.mxu0
        %923 = vst [vmem:[%s347 + $0x2] sm:$0x1] %v920
        %vm924 = vcmp.eq.s32.totalorder %v682, 3
        %v925 = vsel %vm924, %v370, 0.0
        %926 = vmatprep.subr.mxu0 0.0
        %927 = vmatpush1.msra.mxu0 %v925
        %928 = vmatprep.subr.mxu0 0.0
        %929 = vmatpush1.msra.mxu0 0.0
        %930 = vmatprep.subr.mxu0 0.0
        %931 = vmatpush1.msra.mxu0 0.0
        %932 = vmatprep.subr.mxu0 0.0
        %933 = vmatpush1.msra.mxu0 0.0
        %934 = vmatprep.subr.mxu0 0.0
        %935 = vmatpush1.msra.mxu0 0.0
        %936 = vmatprep.subr.mxu0 0.0
        %937 = vmatpush1.msra.mxu0 0.0
        %938 = vmatprep.subr.mxu0 0.0
        %939 = vmatpush1.msra.mxu0 0.0
        %940 = vmatprep.subr.mxu0 0.0
        %941 = vmatpush1.msra.mxu0 0.0
        %942 = vmatprep.subr.mxu0 0.0
        %943 = vmatpush1.msra.mxu0 0.0
        %944 = vmatprep.subr.mxu0 0.0
        %945 = vmatpush1.msra.mxu0 0.0
        %946 = vmatprep.subr.mxu0 0.0
        %947 = vmatpush1.msra.mxu0 0.0
        %948 = vmatprep.subr.mxu0 0.0
        %949 = vmatpush1.msra.mxu0 0.0
        %950 = vmatprep.subr.mxu0 0.0
        %951 = vmatpush1.msra.mxu0 0.0
        %952 = vmatprep.subr.mxu0 0.0
        %953 = vmatpush1.msra.mxu0 0.0
        %954 = vmatprep.subr.mxu0 0.0
        %955 = vmatpush1.msra.mxu0 0.0
        %956 = vmatprep.subr.mxu0 0.0
        %957 = vmatpush1.msra.mxu0 0.0
        %958 = vmatprep.subr.mxu0 0.0
        %959 = vmatpush1.msra.mxu0 0.0
        %960 = vmatprep.subr.mxu0 0.0
        %961 = vmatpush1.msra.mxu0 0.0
        %962 = vmatprep.subr.mxu0 0.0
        %963 = vmatpush1.msra.mxu0 0.0
        %964 = vmatprep.subr.mxu0 0.0
        %965 = vmatpush1.msra.mxu0 0.0
        %966 = vmatprep.subr.mxu0 0.0
        %967 = vmatpush1.msra.mxu0 0.0
        %968 = vmatprep.subr.mxu0 0.0
        %969 = vmatpush1.msra.mxu0 0.0
        %970 = vmatprep.subr.mxu0 0.0
        %971 = vmatpush1.msra.mxu0 0.0
        %972 = vmatprep.subr.mxu0 0.0
        %973 = vmatpush1.msra.mxu0 0.0
        %974 = vmatprep.subr.mxu0 0.0
        %975 = vmatpush1.msra.mxu0 0.0
        %976 = vmatprep.subr.mxu0 0.0
        %977 = vmatpush1.msra.mxu0 0.0
        %978 = vmatprep.subr.mxu0 0.0
        %979 = vmatpush1.msra.mxu0 0.0
        %980 = vmatprep.subr.mxu0 0.0
        %981 = vmatpush1.msra.mxu0 0.0
        %982 = vmatprep.subr.mxu0 0.0
        %983 = vmatpush1.msra.mxu0 0.0
        %984 = vmatprep.subr.mxu0 0.0
        %985 = vmatpush1.msra.mxu0 0.0
        %986 = vmatprep.subr.mxu0 0.0
        %987 = vmatpush1.msra.mxu0 0.0
        %988 = vmatprep.subr.mxu0 0.0
        %989 = vmatpush1.msra.mxu0 0.0
        %990 = vmatprep.mubr.f32.mxu0 0.0
        %991 = vmatmul.mubr.f32.gmra.mrb[0].mxu0 %v375
        %v992 = vpop.f32.mrb[0].mxu0
        %v993 = vadd.f32 0.0, %v992
        %v994 = vpop.f32.mrb[0].mxu0
        %995 = vdwg.mxu0
        %996 = vst [vmem:[%s347 + $0x3] sm:$0x1] %v993
        %v997 = vrot.slane %v704, 4
        %v998 = vadd.f32 %v704, %v997
        %v999 = vrot.slane %v998, 2
        %v1000 = vadd.f32 %v998, %v999
        %v1001 = vrot.slane %v1000, 1
        %v1002 = vadd.f32 %v1000, %v1001
        %1003 = vst [vmem:[%s347 + $0x4] sm:$0x1] %v1002
        %v1004 = vld [vmem:[%s306] sm:$0xff]
        %s1005 = scalar_lea.vmem %s306, 8 [#allocation5]
        %v1006 = vld [vmem:[%s1005] sm:$0xff]
        %s1007 = scalar_lea.vmem %s306, 16 [#allocation5]
        %v1008 = vld [vmem:[%s1007] sm:$0xff]
        %s1009 = scalar_lea.vmem %s306, 24 [#allocation5]
        %v1010 = vld [vmem:[%s1009] sm:$0xff]
        %vm1011 = vcmp.gt.f32.partialorder %v1006, %v1004
        %v1012 = vsel %vm1011, %v1006, %v1004
        %v1013 = vsel %vm1011, 1, 0
        %vm1014 = vcmp.gt.f32.partialorder %v1008, %v1012
        %v1015 = vsel %vm1014, %v1008, %v1012
        %v1016 = vsel %vm1014, 2, %v1013
        %vm1017 = vcmp.gt.f32.partialorder %v1010, %v1015
        %v1018 = vsel %vm1017, %v1010, %v1015
        %v1019 = vsel %vm1017, 3, %v1016
        %v1020 = vsub.f32 %v1004, %v1018
        %v1021 = vsub.f32 %v1006, %v1018
        %v1022 = vsub.f32 %v1008, %v1018
        %v1023 = vsub.f32 %v1010, %v1018
        %v1024 = vmul.f32 %v1020, 1.442695
        %v1025 = vpow.pop %v1024
        %v1026 = vmul.f32 %v1021, 1.442695
        %v1027 = vpow.pop %v1026
        %v1028 = vadd.f32 %v1025, %v1027
        %v1029 = vmul.f32 %v1022, 1.442695
        %v1030 = vpow.pop %v1029
        %v1031 = vadd.f32 %v1028, %v1030
        %v1032 = vmul.f32 %v1023, 1.442695
        %v1033 = vpow.pop %v1032
        %v1034 = vadd.f32 %v1031, %v1033
        %v1035 = vlog2.pop %v1034
        %v1036 = vmul.f32 %v1035, 0.6931472
        %v1037 = vsel %vm363, %v1020, 0.0
        %v1038 = vsel %vm364, %v1021, %v1037
        %v1039 = vsel %vm365, %v1022, %v1038
        %v1040 = vsel %vm366, %v1023, %v1039
        %v1041 = vsub.f32 %v1036, %v1040
        %vm1042 = vcmp.eq.s32.totalorder %v1019, 0
        %v1043 = vsel %vm1042, %v367, 0.0
        %1044 = vmatprep.subr.mxu0 0.0
        %1045 = vmatpush1.msra.mxu0 %v1043
        %1046 = vmatprep.subr.mxu0 0.0
        %1047 = vmatpush1.msra.mxu0 0.0
        %1048 = vmatprep.subr.mxu0 0.0
        %1049 = vmatpush1.msra.mxu0 0.0
        %1050 = vmatprep.subr.mxu0 0.0
        %1051 = vmatpush1.msra.mxu0 0.0
        %1052 = vmatprep.subr.mxu0 0.0
        %1053 = vmatpush1.msra.mxu0 0.0
        %1054 = vmatprep.subr.mxu0 0.0
        %1055 = vmatpush1.msra.mxu0 0.0
        %1056 = vmatprep.subr.mxu0 0.0
        %1057 = vmatpush1.msra.mxu0 0.0
        %1058 = vmatprep.subr.mxu0 0.0
        %1059 = vmatpush1.msra.mxu0 0.0
        %1060 = vmatprep.subr.mxu0 0.0
        %1061 = vmatpush1.msra.mxu0 0.0
        %1062 = vmatprep.subr.mxu0 0.0
        %1063 = vmatpush1.msra.mxu0 0.0
        %1064 = vmatprep.subr.mxu0 0.0
        %1065 = vmatpush1.msra.mxu0 0.0
        %1066 = vmatprep.subr.mxu0 0.0
        %1067 = vmatpush1.msra.mxu0 0.0
        %1068 = vmatprep.subr.mxu0 0.0
        %1069 = vmatpush1.msra.mxu0 0.0
        %1070 = vmatprep.subr.mxu0 0.0
        %1071 = vmatpush1.msra.mxu0 0.0
        %1072 = vmatprep.subr.mxu0 0.0
        %1073 = vmatpush1.msra.mxu0 0.0
        %1074 = vmatprep.subr.mxu0 0.0
        %1075 = vmatpush1.msra.mxu0 0.0
        %1076 = vmatprep.subr.mxu0 0.0
        %1077 = vmatpush1.msra.mxu0 0.0
        %1078 = vmatprep.subr.mxu0 0.0
        %1079 = vmatpush1.msra.mxu0 0.0
        %1080 = vmatprep.subr.mxu0 0.0
        %1081 = vmatpush1.msra.mxu0 0.0
        %1082 = vmatprep.subr.mxu0 0.0
        %1083 = vmatpush1.msra.mxu0 0.0
        %1084 = vmatprep.subr.mxu0 0.0
        %1085 = vmatpush1.msra.mxu0 0.0
        %1086 = vmatprep.subr.mxu0 0.0
        %1087 = vmatpush1.msra.mxu0 0.0
        %1088 = vmatprep.subr.mxu0 0.0
        %1089 = vmatpush1.msra.mxu0 0.0
        %1090 = vmatprep.subr.mxu0 0.0
        %1091 = vmatpush1.msra.mxu0 0.0
        %1092 = vmatprep.subr.mxu0 0.0
        %1093 = vmatpush1.msra.mxu0 0.0
        %1094 = vmatprep.subr.mxu0 0.0
        %1095 = vmatpush1.msra.mxu0 0.0
        %1096 = vmatprep.subr.mxu0 0.0
        %1097 = vmatpush1.msra.mxu0 0.0
        %1098 = vmatprep.subr.mxu0 0.0
        %1099 = vmatpush1.msra.mxu0 0.0
        %1100 = vmatprep.subr.mxu0 0.0
        %1101 = vmatpush1.msra.mxu0 0.0
        %1102 = vmatprep.subr.mxu0 0.0
        %1103 = vmatpush1.msra.mxu0 0.0
        %1104 = vmatprep.subr.mxu0 0.0
        %1105 = vmatpush1.msra.mxu0 0.0
        %1106 = vmatprep.subr.mxu0 0.0
        %1107 = vmatpush1.msra.mxu0 0.0
        %1108 = vmatprep.mubr.f32.mxu0 0.0
        %1109 = vmatmul.mubr.f32.gmra.mrb[0].mxu0 %v375
        %v1110 = vpop.f32.mrb[0].mxu0
        %v1111 = vadd.f32 0.0, %v1110
        %v1112 = vpop.f32.mrb[0].mxu0
        %1113 = vdwg.mxu0
        %1114 = vst [vmem:[%s354] sm:$0x1] %v1111
        %vm1115 = vcmp.eq.s32.totalorder %v1019, 1
        %v1116 = vsel %vm1115, %v368, 0.0
        %1117 = vmatprep.subr.mxu0 0.0
        %1118 = vmatpush1.msra.mxu0 %v1116
        %1119 = vmatprep.subr.mxu0 0.0
        %1120 = vmatpush1.msra.mxu0 0.0
        %1121 = vmatprep.subr.mxu0 0.0
        %1122 = vmatpush1.msra.mxu0 0.0
        %1123 = vmatprep.subr.mxu0 0.0
        %1124 = vmatpush1.msra.mxu0 0.0
        %1125 = vmatprep.subr.mxu0 0.0
        %1126 = vmatpush1.msra.mxu0 0.0
        %1127 = vmatprep.subr.mxu0 0.0
        %1128 = vmatpush1.msra.mxu0 0.0
        %1129 = vmatprep.subr.mxu0 0.0
        %1130 = vmatpush1.msra.mxu0 0.0
        %1131 = vmatprep.subr.mxu0 0.0
        %1132 = vmatpush1.msra.mxu0 0.0
        %1133 = vmatprep.subr.mxu0 0.0
        %1134 = vmatpush1.msra.mxu0 0.0
        %1135 = vmatprep.subr.mxu0 0.0
        %1136 = vmatpush1.msra.mxu0 0.0
        %1137 = vmatprep.subr.mxu0 0.0
        %1138 = vmatpush1.msra.mxu0 0.0
        %1139 = vmatprep.subr.mxu0 0.0
        %1140 = vmatpush1.msra.mxu0 0.0
        %1141 = vmatprep.subr.mxu0 0.0
        %1142 = vmatpush1.msra.mxu0 0.0
        %1143 = vmatprep.subr.mxu0 0.0
        %1144 = vmatpush1.msra.mxu0 0.0
        %1145 = vmatprep.subr.mxu0 0.0
        %1146 = vmatpush1.msra.mxu0 0.0
        %1147 = vmatprep.subr.mxu0 0.0
        %1148 = vmatpush1.msra.mxu0 0.0
        %1149 = vmatprep.subr.mxu0 0.0
        %1150 = vmatpush1.msra.mxu0 0.0
        %1151 = vmatprep.subr.mxu0 0.0
        %1152 = vmatpush1.msra.mxu0 0.0
        %1153 = vmatprep.subr.mxu0 0.0
        %1154 = vmatpush1.msra.mxu0 0.0
        %1155 = vmatprep.subr.mxu0 0.0
        %1156 = vmatpush1.msra.mxu0 0.0
        %1157 = vmatprep.subr.mxu0 0.0
        %1158 = vmatpush1.msra.mxu0 0.0
        %1159 = vmatprep.subr.mxu0 0.0
        %1160 = vmatpush1.msra.mxu0 0.0
        %1161 = vmatprep.subr.mxu0 0.0
        %1162 = vmatpush1.msra.mxu0 0.0
        %1163 = vmatprep.subr.mxu0 0.0
        %1164 = vmatpush1.msra.mxu0 0.0
        %1165 = vmatprep.subr.mxu0 0.0
        %1166 = vmatpush1.msra.mxu0 0.0
        %1167 = vmatprep.subr.mxu0 0.0
        %1168 = vmatpush1.msra.mxu0 0.0
        %1169 = vmatprep.subr.mxu0 0.0
        %1170 = vmatpush1.msra.mxu0 0.0
        %1171 = vmatprep.subr.mxu0 0.0
        %1172 = vmatpush1.msra.mxu0 0.0
        %1173 = vmatprep.subr.mxu0 0.0
        %1174 = vmatpush1.msra.mxu0 0.0
        %1175 = vmatprep.subr.mxu0 0.0
        %1176 = vmatpush1.msra.mxu0 0.0
        %1177 = vmatprep.subr.mxu0 0.0
        %1178 = vmatpush1.msra.mxu0 0.0
        %1179 = vmatprep.subr.mxu0 0.0
        %1180 = vmatpush1.msra.mxu0 0.0
        %1181 = vmatprep.mubr.f32.mxu0 0.0
        %1182 = vmatmul.mubr.f32.gmra.mrb[0].mxu0 %v375
        %v1183 = vpop.f32.mrb[0].mxu0
        %v1184 = vadd.f32 0.0, %v1183
        %v1185 = vpop.f32.mrb[0].mxu0
        %1186 = vdwg.mxu0
        %1187 = vst [vmem:[%s354 + $0x1] sm:$0x1] %v1184
        %vm1188 = vcmp.eq.s32.totalorder %v1019, 2
        %v1189 = vsel %vm1188, %v369, 0.0
        %1190 = vmatprep.subr.mxu0 0.0
        %1191 = vmatpush1.msra.mxu0 %v1189
        %1192 = vmatprep.subr.mxu0 0.0
        %1193 = vmatpush1.msra.mxu0 0.0
        %1194 = vmatprep.subr.mxu0 0.0
        %1195 = vmatpush1.msra.mxu0 0.0
        %1196 = vmatprep.subr.mxu0 0.0
        %1197 = vmatpush1.msra.mxu0 0.0
        %1198 = vmatprep.subr.mxu0 0.0
        %1199 = vmatpush1.msra.mxu0 0.0
        %1200 = vmatprep.subr.mxu0 0.0
        %1201 = vmatpush1.msra.mxu0 0.0
        %1202 = vmatprep.subr.mxu0 0.0
        %1203 = vmatpush1.msra.mxu0 0.0
        %1204 = vmatprep.subr.mxu0 0.0
        %1205 = vmatpush1.msra.mxu0 0.0
        %1206 = vmatprep.subr.mxu0 0.0
        %1207 = vmatpush1.msra.mxu0 0.0
        %1208 = vmatprep.subr.mxu0 0.0
        %1209 = vmatpush1.msra.mxu0 0.0
        %1210 = vmatprep.subr.mxu0 0.0
        %1211 = vmatpush1.msra.mxu0 0.0
        %1212 = vmatprep.subr.mxu0 0.0
        %1213 = vmatpush1.msra.mxu0 0.0
        %1214 = vmatprep.subr.mxu0 0.0
        %1215 = vmatpush1.msra.mxu0 0.0
        %1216 = vmatprep.subr.mxu0 0.0
        %1217 = vmatpush1.msra.mxu0 0.0
        %1218 = vmatprep.subr.mxu0 0.0
        %1219 = vmatpush1.msra.mxu0 0.0
        %1220 = vmatprep.subr.mxu0 0.0
        %1221 = vmatpush1.msra.mxu0 0.0
        %1222 = vmatprep.subr.mxu0 0.0
        %1223 = vmatpush1.msra.mxu0 0.0
        %1224 = vmatprep.subr.mxu0 0.0
        %1225 = vmatpush1.msra.mxu0 0.0
        %1226 = vmatprep.subr.mxu0 0.0
        %1227 = vmatpush1.msra.mxu0 0.0
        %1228 = vmatprep.subr.mxu0 0.0
        %1229 = vmatpush1.msra.mxu0 0.0
        %1230 = vmatprep.subr.mxu0 0.0
        %1231 = vmatpush1.msra.mxu0 0.0
        %1232 = vmatprep.subr.mxu0 0.0
        %1233 = vmatpush1.msra.mxu0 0.0
        %1234 = vmatprep.subr.mxu0 0.0
        %1235 = vmatpush1.msra.mxu0 0.0
        %1236 = vmatprep.subr.mxu0 0.0
        %1237 = vmatpush1.msra.mxu0 0.0
        %1238 = vmatprep.subr.mxu0 0.0
        %1239 = vmatpush1.msra.mxu0 0.0
        %1240 = vmatprep.subr.mxu0 0.0
        %1241 = vmatpush1.msra.mxu0 0.0
        %1242 = vmatprep.subr.mxu0 0.0
        %1243 = vmatpush1.msra.mxu0 0.0
        %1244 = vmatprep.subr.mxu0 0.0
        %1245 = vmatpush1.msra.mxu0 0.0
        %1246 = vmatprep.subr.mxu0 0.0
        %1247 = vmatpush1.msra.mxu0 0.0
        %1248 = vmatprep.subr.mxu0 0.0
        %1249 = vmatpush1.msra.mxu0 0.0
        %1250 = vmatprep.subr.mxu0 0.0
        %1251 = vmatpush1.msra.mxu0 0.0
        %1252 = vmatprep.subr.mxu0 0.0
        %1253 = vmatpush1.msra.mxu0 0.0
        %1254 = vmatprep.mubr.f32.mxu0 0.0
        %1255 = vmatmul.mubr.f32.gmra.mrb[0].mxu0 %v375
        %v1256 = vpop.f32.mrb[0].mxu0
        %v1257 = vadd.f32 0.0, %v1256
        %v1258 = vpop.f32.mrb[0].mxu0
        %1259 = vdwg.mxu0
        %1260 = vst [vmem:[%s354 + $0x2] sm:$0x1] %v1257
        %vm1261 = vcmp.eq.s32.totalorder %v1019, 3
        %v1262 = vsel %vm1261, %v370, 0.0
        %1263 = vmatprep.subr.mxu0 0.0
        %1264 = vmatpush1.msra.mxu0 %v1262
        %1265 = vmatprep.subr.mxu0 0.0
        %1266 = vmatpush1.msra.mxu0 0.0
        %1267 = vmatprep.subr.mxu0 0.0
        %1268 = vmatpush1.msra.mxu0 0.0
        %1269 = vmatprep.subr.mxu0 0.0
        %1270 = vmatpush1.msra.mxu0 0.0
        %1271 = vmatprep.subr.mxu0 0.0
        %1272 = vmatpush1.msra.mxu0 0.0
        %1273 = vmatprep.subr.mxu0 0.0
        %1274 = vmatpush1.msra.mxu0 0.0
        %1275 = vmatprep.subr.mxu0 0.0
        %1276 = vmatpush1.msra.mxu0 0.0
        %1277 = vmatprep.subr.mxu0 0.0
        %1278 = vmatpush1.msra.mxu0 0.0
        %1279 = vmatprep.subr.mxu0 0.0
        %1280 = vmatpush1.msra.mxu0 0.0
        %1281 = vmatprep.subr.mxu0 0.0
        %1282 = vmatpush1.msra.mxu0 0.0
        %1283 = vmatprep.subr.mxu0 0.0
        %1284 = vmatpush1.msra.mxu0 0.0
        %1285 = vmatprep.subr.mxu0 0.0
        %1286 = vmatpush1.msra.mxu0 0.0
        %1287 = vmatprep.subr.mxu0 0.0
        %1288 = vmatpush1.msra.mxu0 0.0
        %1289 = vmatprep.subr.mxu0 0.0
        %1290 = vmatpush1.msra.mxu0 0.0
        %1291 = vmatprep.subr.mxu0 0.0
        %1292 = vmatpush1.msra.mxu0 0.0
        %1293 = vmatprep.subr.mxu0 0.0
        %1294 = vmatpush1.msra.mxu0 0.0
        %1295 = vmatprep.subr.mxu0 0.0
        %1296 = vmatpush1.msra.mxu0 0.0
        %1297 = vmatprep.subr.mxu0 0.0
        %1298 = vmatpush1.msra.mxu0 0.0
        %1299 = vmatprep.subr.mxu0 0.0
        %1300 = vmatpush1.msra.mxu0 0.0
        %1301 = vmatprep.subr.mxu0 0.0
        %1302 = vmatpush1.msra.mxu0 0.0
        %1303 = vmatprep.subr.mxu0 0.0
        %1304 = vmatpush1.msra.mxu0 0.0
        %1305 = vmatprep.subr.mxu0 0.0
        %1306 = vmatpush1.msra.mxu0 0.0
        %1307 = vmatprep.subr.mxu0 0.0
        %1308 = vmatpush1.msra.mxu0 0.0
        %1309 = vmatprep.subr.mxu0 0.0
        %1310 = vmatpush1.msra.mxu0 0.0
        %1311 = vmatprep.subr.mxu0 0.0
        %1312 = vmatpush1.msra.mxu0 0.0
        %1313 = vmatprep.subr.mxu0 0.0
        %1314 = vmatpush1.msra.mxu0 0.0
        %1315 = vmatprep.subr.mxu0 0.0
        %1316 = vmatpush1.msra.mxu0 0.0
        %1317 = vmatprep.subr.mxu0 0.0
        %1318 = vmatpush1.msra.mxu0 0.0
        %1319 = vmatprep.subr.mxu0 0.0
        %1320 = vmatpush1.msra.mxu0 0.0
        %1321 = vmatprep.subr.mxu0 0.0
        %1322 = vmatpush1.msra.mxu0 0.0
        %1323 = vmatprep.subr.mxu0 0.0
        %1324 = vmatpush1.msra.mxu0 0.0
        %1325 = vmatprep.subr.mxu0 0.0
        %1326 = vmatpush1.msra.mxu0 0.0
        %1327 = vmatprep.mubr.f32.mxu0 0.0
        %1328 = vmatmul.mubr.f32.gmra.mrb[0].mxu0 %v375
        %v1329 = vpop.f32.mrb[0].mxu0
        %v1330 = vadd.f32 0.0, %v1329
        %v1331 = vpop.f32.mrb[0].mxu0
        %1332 = vdwg.mxu0
        %1333 = vst [vmem:[%s354 + $0x3] sm:$0x1] %v1330
        %v1334 = vrot.slane %v1041, 4
        %v1335 = vadd.f32 %v1041, %v1334
        %v1336 = vrot.slane %v1335, 2
        %v1337 = vadd.f32 %v1335, %v1336
        %v1338 = vrot.slane %v1337, 1
        %v1339 = vadd.f32 %v1337, %v1338
        %1340 = vst [vmem:[%s354 + $0x4] sm:$0x1] %v1339
        %s1341 = sand.u32 %s135, 1
        %s1342 = scalar_lea.sflag [#allocation4], %s1341
        %s1343 = sand.u32 %s135, 1
        %s1344 = smul.addr %s1343, 8
        %s1345 = scalar_lea.vmem [#allocation8], %s1344
        %s1346 = sand.u32 %s29, 1
        %s1347 = scalar_lea.sflag [#allocation10], %s1346
        %s1348 = sand.u32 %s163, 1
        %s1349 = smul.addr %s1348, 8
        %s1350 = scalar_lea.vmem [#allocation9], %s1349
        %s1351 = sand.u32 %s29, 1
        %s1352 = scalar_lea.sflag [#allocation10], %s1351
        %s1353 = sand.u32 %s191, 1
        %s1354 = smul.addr %s1353, 8
        %s1355 = scalar_lea.vmem [#allocation11], %s1354
        // Predicated region
        $region45: #{tpu_custom_call.1} parent=31 // pred_check
          %p1356 = pneg %p145
        $region46: #{tpu_custom_call.1} parent=31 // pred_check_branch
          %1358 = sbr.rel (%p1356) target = $region48
        $region47: #{tpu_custom_call.1} parent=31 // pred_region
          %s1360 = ssub.s32 128, 128
          %1361 = vsyncadd %s1342, %s1360
          %s1362 = sadd.s32 %s34, %s33
          %s1363 = smul.addr %s1362, 128
          %s1364 = scalar_lea.hbm %s3, %s1363
          %s1366 = sshll.u32 %s1345, 4
          %s1367 = int_to_ptr.vmem [resolvable:$true] %s1366
          %1369 = dma.vmem_to_hbm [thread:$0]  %s1367, 128, %s1364, %s1342
        $region48: #{tpu_custom_call.1} parent=31 // pred_fallthru
          _
        // Predicated region
        $region49: #{tpu_custom_call.1} parent=31 // pred_check
          %p1370 = pneg %p173
        $region50: #{tpu_custom_call.1} parent=31 // pred_check_branch
          %1372 = sbr.rel (%p1370) target = $region52
        $region51: #{tpu_custom_call.1} parent=31 // pred_region
          %s1374 = ssub.s32 128, 128
          %1375 = vsyncadd %s1347, %s1374
          %s1376 = sadd.s32 %s34, %s33
          %s1377 = smul.addr %s1376, 128
          %s1378 = scalar_lea.hbm %s4, %s1377
          %s1380 = sshll.u32 %s1350, 4
          %s1381 = int_to_ptr.vmem [resolvable:$true] %s1380
          %1383 = dma.vmem_to_hbm [thread:$0]  %s1381, 128, %s1378, %s1347
        $region52: #{tpu_custom_call.1} parent=31 // pred_fallthru
          _
        // Predicated region
        $region53: #{tpu_custom_call.1} parent=31 // pred_check
          %p1384 = pneg %p201
        $region54: #{tpu_custom_call.1} parent=31 // pred_check_branch
          %1386 = sbr.rel (%p1384) target = $region56
        $region55: #{tpu_custom_call.1} parent=31 // pred_region
          %s1388 = ssub.s32 128, 128
          %1389 = vsyncadd %s1352, %s1388
          %s1390 = sadd.s32 %s34, %s33
          %s1391 = smul.addr %s1390, 128
          %s1392 = scalar_lea.hbm %s5, %s1391
          %s1394 = sshll.u32 %s1355, 4
          %s1395 = int_to_ptr.vmem [resolvable:$true] %s1394
          %1397 = dma.vmem_to_hbm [thread:$0]  %s1395, 128, %s1392, %s1352
        $region56: #{tpu_custom_call.1} parent=31 // pred_fallthru
          _
      $region32: #{tpu_custom_call.1} parent=5 // pred_fallthru
        _
      %p1398 = scmp.le.s32.totalorder 2, %s24
      // Predicated region
      $region57: #{tpu_custom_call.1} parent=5 // pred_check
        %p1399 = pneg %p1398
      $region58: #{tpu_custom_call.1} parent=5 // pred_check_branch
        %1401 = sbr.rel (%p1399) target = $region60
      $region59: #{tpu_custom_call.1} parent=5 // pred_region
        %s1402 = ssub.s32 %s24, 2
        // Predicated region
        $region61: #{tpu_custom_call.1} parent=59 // pred_check
          %p1403 = pneg %p151
        $region62: #{tpu_custom_call.1} parent=59 // pred_check_branch
          %1405 = sbr.rel (%p1403) target = $region64
        $region63: #{tpu_custom_call.1} parent=59 // pred_region
          %s1406 = sand.u32 %s136, 1
          %s1407 = scalar_lea.sflag [#allocation4], %s1406
          %s1408 = sand.u32 %s136, 1
          %s1409 = smul.addr %s1408, 8
          %s1410 = scalar_lea.vmem [#allocation8], %s1409
          %1411 = dma.done %s1407, 128
        $region64: #{tpu_custom_call.1} parent=59 // pred_fallthru
          _
        // Predicated region
        $region65: #{tpu_custom_call.1} parent=59 // pred_check
          %p1412 = pneg %p179
        $region66: #{tpu_custom_call.1} parent=59 // pred_check_branch
          %1414 = sbr.rel (%p1412) target = $region68
        $region67: #{tpu_custom_call.1} parent=59 // pred_region
          %s1415 = sand.u32 %s30, 1
          %s1416 = scalar_lea.sflag [#allocation10], %s1415
          %s1417 = sand.u32 %s164, 1
          %s1418 = smul.addr %s1417, 8
          %s1419 = scalar_lea.vmem [#allocation9], %s1418
          %1420 = dma.done %s1416, 128
        $region68: #{tpu_custom_call.1} parent=59 // pred_fallthru
          _
        // Predicated region
        $region69: #{tpu_custom_call.1} parent=59 // pred_check
          %p1421 = pneg %p207
        $region70: #{tpu_custom_call.1} parent=59 // pred_check_branch
          %1423 = sbr.rel (%p1421) target = $region72
        $region71: #{tpu_custom_call.1} parent=59 // pred_region
          %s1424 = sand.u32 %s30, 1
          %s1425 = scalar_lea.sflag [#allocation10], %s1424
          %s1426 = sand.u32 %s192, 1
          %s1427 = smul.addr %s1426, 8
          %s1428 = scalar_lea.vmem [#allocation11], %s1427
          %1429 = dma.done %s1425, 128
        $region72: #{tpu_custom_call.1} parent=59 // pred_fallthru
          _
      $region60: #{tpu_custom_call.1} parent=5 // pred_fallthru
        _
    $region6: #{tpu_custom_call.1} parent=1 // loop_footer
      %s28 = sadd.s32 1, %s24
    $region7: #{tpu_custom_call.1} parent=1 // loop_footer_branch
      %23 = sbr.rel target = $region3
    $region8: #{tpu_custom_call.1} parent=1 // loop_exit
      _
    %1430 = vsyncpa [#allocation3], 1
    %s1431 = scalar_lea.sflag [#allocation3], 1
    %1432 = vsyncpa %s1431, 1
    %1433 = vsyncpa [#allocation6], 1
    %s1434 = scalar_lea.sflag [#allocation6], 1
    %1435 = vsyncpa %s1434, 1
    %1436 = vsyncpa [#allocation4], 1
    %s1437 = scalar_lea.sflag [#allocation4], 1
    %1438 = vsyncpa %s1437, 1
    %1439 = vsyncpa [#allocation10], 1
    %s1440 = scalar_lea.sflag [#allocation10], 1
    %1441 = vsyncpa %s1440, 1

</llo_original>
